<compile_context>
chip_gen: v6e
topology: v6e:2x2x1
jax: 0.10.0
libtpu: 0.0.40
codegen_flags: <defaults>
</compile_context>

<pallas_src>
import math

import jax
import jax.numpy as jnp
from jax.experimental import pallas as pl
from jax.experimental.pallas import tpu as pltpu


# ----------------------------------------------------------------------------
# Fused kernel (single invocation, no grid):
#   K = r_flat @ Wk + bk            (B*S, H*A)
#   V = r_flat @ Wv + bv            (B*S, H*A)
#   per head h (static unrolled loop, batched over B):
#     scores = softmax(Q_h @ K_h^T / sqrt(A))        (B, S, S)
#     atten_h = colsum_q(scores) @ V_h               (B, 1, A)
#     acc += LeakyReLU(atten_h) * w_h                (B, 1, A)
#   partial[b] = sum_lanes(acc[b])                   (B, 1)
# ----------------------------------------------------------------------------
def _make_fused_kernel(batch, split_num, attem_dim, head_num):
    B, S, A, H = batch, split_num, attem_dim, head_num
    HA = H * A
    scale = 1.0 / math.sqrt(A)

    def kernel(q_ref, r_ref, wk_ref, bk_ref, wv_ref, bv_ref, w_ref, part_ref):
        # K / V projections: one wide MXU matmul each over all B*S rows.
        rr = r_ref[...]                                                  # (B*S, A)
        k_all = jnp.dot(rr, wk_ref[...],
                        preferred_element_type=jnp.float32) + bk_ref[...]  # (B*S, HA)
        v_all = jnp.dot(rr, wv_ref[...],
                        preferred_element_type=jnp.float32) + bv_ref[...]  # (B*S, HA)

        # Leading-dim split only (layout preserving): (B*S, HA) -> (B, S, HA).
        k3 = k_all.reshape(B, S, HA)
        v3 = v_all.reshape(B, S, HA)
        q3 = q_ref[...]                                                  # (B, S, HA)
        w3 = w_ref[...]                                                  # (B, 1, HA)

        acc = jnp.zeros((B, 1, A), jnp.float32)
        for h in range(H):                       # static unroll; batched over B
            lo = h * A
            q_h = q3[:, :, lo:lo + A]            # (B, S, A)
            k_h = k3[:, :, lo:lo + A]            # (B, S, A)
            v_h = v3[:, :, lo:lo + A]            # (B, S, A)

            # Batched (B) scores: contract on A, no transpose op.
            s = jnp.einsum("bqa,bka->bqk", q_h, k_h,
                           preferred_element_type=jnp.float32) * scale   # (B, S, S)
            s = s - jnp.max(s, axis=-1, keepdims=True)
            e = jnp.exp(s)
            p = e * pl.reciprocal(jnp.sum(e, axis=-1, keepdims=True),
                                  approx=True)                           # (B, S, S)

            # Sum over query rows first, then one batched (1,S)@(S,A) PV matmul.
            colw = jnp.sum(p, axis=1, keepdims=True)                     # (B, 1, S)
            out_h = jnp.einsum("bqs,bsa->bqa", colw, v_h,
                               preferred_element_type=jnp.float32)       # (B, 1, A)

            act_h = jnp.where(out_h > 0, out_h, 0.01 * out_h)            # LeakyReLU
            acc = acc + act_h * w3[:, :, lo:lo + A]                      # (B, 1, A)

        # Single lane reduction at the end -> per-batch partial sums.
        part_ref[...] = jnp.sum(acc, axis=-1)                            # (B, 1)

    return kernel


def duration_fusion_forward(r, d, params, *, split_num, attem_dim, head_num,
                            emb_dim):
    S, A, H, E = split_num, attem_dim, head_num, emb_dim
    HA = H * A
    B = d.shape[0]

    # ---- XLA glue in the wrapper (per review: hoist tiny 1-row projections) --
    d1 = params["emb1"][d]                                   # (B, E) gather
    d2 = params["emb2"][d]                                   # (B, E) gather
    # q projection: one lane-dense (B,E)@(E,S*H*A) matmul, reshaped so the
    # kernel sees the same (s-major, (h,a)-lanes) layout as K / V.
    q3 = (d1 @ params["Wq"] + params["bq"]).reshape(B, S, HA)       # (B, S, HA)
    w3 = (d2 @ params["Ww"] + params["bw"]).reshape(B, 1, HA)       # (B, 1, HA)
    bias = d2 @ params["Wb"] + params["bb"]                         # (B, 1)

    r_flat = r.reshape(B * S, A)                                    # (B*S, A)
    bk_row = params["bk"][None, :]                                  # (1, HA)
    bv_row = params["bv"][None, :]                                  # (1, HA)

    vmem = pl.BlockSpec(memory_space=pltpu.MemorySpace.VMEM)

    # Single kernel invocation (no grid): all batches / heads processed in one
    # fat step; every array is DMA'd to VMEM exactly once.
    partial = pl.pallas_call(
        _make_fused_kernel(B, S, A, H),
        out_shape=jax.ShapeDtypeStruct((B, 1), jnp.float32),
        in_specs=[vmem] * 7,
        out_specs=vmem,
    )(q3, r_flat, params["Wk"], bk_row, params["Wv"], bv_row, w3)

    # Global sum of LeakyReLU(atten)*w across the batch (matches torch.sum),
    # plus the per-batch fc_b bias — a trivial reduction left to XLA.
    return jnp.sum(partial) + bias                                  # (B, 1)


# ----------------------------------------------------------------------------
# Pure-JAX reference that mirrors the PyTorch forward exactly.
# ----------------------------------------------------------------------------
def reference_forward(r, d, params, *, split_num, attem_dim, head_num, emb_dim):
    S, A, H = split_num, attem_dim, head_num
    d1 = params["emb1"][d]
    d2 = params["emb2"][d]
    r3 = r.reshape(-1, S, A)
    q = (d1 @ params["Wq"] + params["bq"]).reshape(-1, S, H, A)
    k = (r3 @ params["Wk"] + params["bk"]).reshape(-1, S, H, A)
    v = (r3 @ params["Wv"] + params["bv"]).reshape(-1, S, H, A)
    q = q.transpose(0, 2, 1, 3)
    k = k.transpose(0, 2, 1, 3)
    v = v.transpose(0, 2, 1, 3)
    scores = jnp.einsum("bhsa,bhta->bhst", q, k) / math.sqrt(A)
    scores = jax.nn.softmax(scores, axis=-1)
    out = jnp.einsum("bhst,bhta->bhsa", scores, v).sum(axis=2)   # (B, H, A)
    atten = out.reshape(-1, H * A)
    w = d2 @ params["Ww"] + params["bw"]
    b = d2 @ params["Wb"] + params["bb"]
    act = jnp.where(atten > 0, atten, 0.01 * atten)
    return jnp.sum(act * w) + b


def init_params(key, emb_dim, attem_dim, head_num, split_num, duration_num):
    E, A, H, S = emb_dim, attem_dim, head_num, split_num
    ks = jax.random.split(key, 12)

    def nrm(k, shape, scale):
        return jax.random.normal(k, shape, dtype=jnp.float32) * scale

    return {
        "emb1": nrm(ks[0], (duration_num, E), 0.1),
        "emb2": nrm(ks[1], (duration_num, E), 0.1),
        "Wq": nrm(ks[2], (E, S * H * A), 1.0 / math.sqrt(E)),
        "bq": nrm(ks[3], (S * H * A,), 0.02),
        "Wk": nrm(ks[4], (A, H * A), 1.0 / math.sqrt(A)),
        "bk": nrm(ks[5], (H * A,), 0.02),
        "Wv": nrm(ks[6], (A, H * A), 1.0 / math.sqrt(A)),
        "bv": nrm(ks[7], (H * A,), 0.02),
        "Ww": nrm(ks[8], (E, H * A), 1.0 / math.sqrt(E)),
        "bw": nrm(ks[9], (H * A,), 0.02),
        "Wb": nrm(ks[10], (E, 1), 1.0 / math.sqrt(E)),
        "bb": nrm(ks[11], (1,), 0.02),
    }


if __name__ == "__main__":
    B = 2
    EMB, ATT, HEADS, SPLIT, DUR = 32, 8, 4, 8, 10
    INPUT_DIM = SPLIT * ATT                       # r flattens to (B, S*A)

    key = jax.random.PRNGKey(0)
    k_r, k_d, k_p = jax.random.split(key, 3)
    r = jax.random.normal(k_r, (B, INPUT_DIM), dtype=jnp.float32)
    d = jax.random.randint(k_d, (B,), 0, DUR, dtype=jnp.int32)
    params = init_params(k_p, EMB, ATT, HEADS, SPLIT, DUR)

    out = duration_fusion_forward(r, d, params, split_num=SPLIT,
                                  attem_dim=ATT, head_num=HEADS, emb_dim=EMB)
    out = jax.block_until_ready(out)

    ref = reference_forward(r, d, params, split_num=SPLIT, attem_dim=ATT,
                            head_num=HEADS, emb_dim=EMB)
    assert out.shape == (B, 1), out.shape
    # tolerance accommodates the EUP approximate-reciprocal softmax denominator
    if not jnp.allclose(out, ref, atol=5e-3, rtol=5e-3):
        raise AssertionError(f"Pallas/reference mismatch:\n{out}\nvs\n{ref}")
    print("KERNEL_OK")
</pallas_src>

<mosaic_0001>
module attributes {stable_mosaic.version = 11 : i64} {
  func.func @kernel(%arg0: memref<2x8x32xf32, #tpu.memory_space<vmem>>, %arg1: memref<16x8xf32, #tpu.memory_space<vmem>>, %arg2: memref<8x32xf32, #tpu.memory_space<vmem>>, %arg3: memref<1x32xf32, #tpu.memory_space<vmem>>, %arg4: memref<8x32xf32, #tpu.memory_space<vmem>>, %arg5: memref<1x32xf32, #tpu.memory_space<vmem>>, %arg6: memref<2x1x32xf32, #tpu.memory_space<vmem>>, %arg7: memref<2x1xf32, #tpu.memory_space<vmem>>) attributes {dimension_semantics = [], scalar_prefetch = 0 : i64, scratch_operands = 0 : i64, tpu.core_type = #tpu.core_type<tc>} {
    %c0 = arith.constant 0 : index
    %c0_0 = arith.constant 0 : index
    %0 = vector.load %arg1[%c0, %c0_0] : memref<16x8xf32, #tpu.memory_space<vmem>>, vector<16x8xf32>
    %c0_1 = arith.constant 0 : index
    %c0_2 = arith.constant 0 : index
    %1 = vector.load %arg2[%c0_1, %c0_2] : memref<8x32xf32, #tpu.memory_space<vmem>>, vector<8x32xf32>
    %cst = arith.constant dense<0.000000e+00> : vector<16x32xf32>
    %2 = tpu.matmul %0, %1, %cst {dimension_numbers = #tpu.dot_dimension_numbers<[1], [0], [0], [1], [0, 0, 1, 1], [], []>} : vector<16x8xf32>, vector<8x32xf32>, vector<16x32xf32> -> vector<16x32xf32>
    %c0_3 = arith.constant 0 : index
    %c0_4 = arith.constant 0 : index
    %3 = vector.load %arg3[%c0_3, %c0_4] : memref<1x32xf32, #tpu.memory_space<vmem>>, vector<1x32xf32>
    %4 = vector.broadcast %3 : vector<1x32xf32> to vector<16x32xf32>
    %5 = arith.addf %2, %4 : vector<16x32xf32>
    %c0_5 = arith.constant 0 : index
    %c0_6 = arith.constant 0 : index
    %6 = vector.load %arg4[%c0_5, %c0_6] : memref<8x32xf32, #tpu.memory_space<vmem>>, vector<8x32xf32>
    %cst_7 = arith.constant dense<0.000000e+00> : vector<16x32xf32>
    %7 = tpu.matmul %0, %6, %cst_7 {dimension_numbers = #tpu.dot_dimension_numbers<[1], [0], [0], [1], [0, 0, 1, 1], [], []>} : vector<16x8xf32>, vector<8x32xf32>, vector<16x32xf32> -> vector<16x32xf32>
    %c0_8 = arith.constant 0 : index
    %c0_9 = arith.constant 0 : index
    %8 = vector.load %arg5[%c0_8, %c0_9] : memref<1x32xf32, #tpu.memory_space<vmem>>, vector<1x32xf32>
    %9 = vector.broadcast %8 : vector<1x32xf32> to vector<16x32xf32>
    %10 = arith.addf %7, %9 : vector<16x32xf32>
    %11 = vector.shape_cast %5 : vector<16x32xf32> to vector<2x8x32xf32>
    %12 = vector.shape_cast %10 : vector<16x32xf32> to vector<2x8x32xf32>
    %c0_10 = arith.constant 0 : index
    %c0_11 = arith.constant 0 : index
    %c0_12 = arith.constant 0 : index
    %13 = vector.load %arg0[%c0_10, %c0_11, %c0_12] : memref<2x8x32xf32, #tpu.memory_space<vmem>>, vector<2x8x32xf32>
    %c0_13 = arith.constant 0 : index
    %c0_14 = arith.constant 0 : index
    %c0_15 = arith.constant 0 : index
    %14 = vector.load %arg6[%c0_13, %c0_14, %c0_15] : memref<2x1x32xf32, #tpu.memory_space<vmem>>, vector<2x1x32xf32>
    %cst_16 = arith.constant 0.000000e+00 : f32
    %15 = vector.broadcast %cst_16 : f32 to vector<2x1x8xf32>
    %16 = vector.extract_strided_slice %13 {offsets = [0, 0, 0], sizes = [2, 8, 8], strides = [1, 1, 1]} : vector<2x8x32xf32> to vector<2x8x8xf32>
    %17 = vector.extract_strided_slice %11 {offsets = [0, 0, 0], sizes = [2, 8, 8], strides = [1, 1, 1]} : vector<2x8x32xf32> to vector<2x8x8xf32>
    %18 = vector.extract_strided_slice %12 {offsets = [0, 0, 0], sizes = [2, 8, 8], strides = [1, 1, 1]} : vector<2x8x32xf32> to vector<2x8x8xf32>
    "tpu.trace_start"() <{level = 10 : i32, message = "bqa,bka->bqk"}> : () -> ()
    %cst_17 = arith.constant dense<0.000000e+00> : vector<2x8x8xf32>
    %19 = tpu.matmul %16, %17, %cst_17 {dimension_numbers = #tpu.dot_dimension_numbers<[2], [2], [1], [1], [0, 0, 0, 1, 1, 1], [0], [0]>} : vector<2x8x8xf32>, vector<2x8x8xf32>, vector<2x8x8xf32> -> vector<2x8x8xf32>
    "tpu.trace_stop"() : () -> ()
    %cst_18 = arith.constant 0.353553385 : f32
    %20 = vector.broadcast %cst_18 : f32 to vector<2x8x8xf32>
    %21 = arith.mulf %19, %20 : vector<2x8x8xf32>
    %cst_19 = arith.constant dense<0xFF800000> : vector<2x8xf32>
    %22 = vector.multi_reduction <maximumf>, %21, %cst_19 [2] : vector<2x8x8xf32> to vector<2x8xf32>
    %23 = vector.shape_cast %22 : vector<2x8xf32> to vector<2x8x1xf32>
    %24 = vector.broadcast %23 : vector<2x8x1xf32> to vector<2x8x8xf32>
    %25 = arith.subf %21, %24 : vector<2x8x8xf32>
    %26 = math.exp %25 : vector<2x8x8xf32>
    %cst_20 = arith.constant dense<0.000000e+00> : vector<2x8xf32>
    %27 = vector.multi_reduction <add>, %26, %cst_20 [2] : vector<2x8x8xf32> to vector<2x8xf32>
    %28 = vector.shape_cast %27 : vector<2x8xf32> to vector<2x8x1xf32>
    %29 = tpu.reciprocal %28 {approx = true} : vector<2x8x1xf32> -> vector<2x8x1xf32>
    %30 = vector.broadcast %29 : vector<2x8x1xf32> to vector<2x8x8xf32>
    %31 = arith.mulf %26, %30 : vector<2x8x8xf32>
    %cst_21 = arith.constant dense<0.000000e+00> : vector<2x8xf32>
    %32 = vector.multi_reduction <add>, %31, %cst_21 [1] : vector<2x8x8xf32> to vector<2x8xf32>
    %33 = vector.shape_cast %32 : vector<2x8xf32> to vector<2x1x8xf32>
    "tpu.trace_start"() <{level = 10 : i32, message = "bqs,bsa->bqa"}> : () -> ()
    %cst_22 = arith.constant dense<0.000000e+00> : vector<2x1x8xf32>
    %34 = tpu.matmul %33, %18, %cst_22 {dimension_numbers = #tpu.dot_dimension_numbers<[2], [1], [1], [2], [0, 0, 0, 1, 1, 2], [0], [0]>} : vector<2x1x8xf32>, vector<2x8x8xf32>, vector<2x1x8xf32> -> vector<2x1x8xf32>
    %cst_23 = arith.constant 0.000000e+00 : f32
    "tpu.trace_stop"() : () -> ()
    %35 = vector.broadcast %cst_23 : f32 to vector<2x1x8xf32>
    %36 = arith.cmpf ogt, %34, %35 : vector<2x1x8xf32>
    %cst_24 = arith.constant 0.00999999977 : f32
    %37 = vector.broadcast %cst_24 : f32 to vector<2x1x8xf32>
    %38 = arith.mulf %37, %34 : vector<2x1x8xf32>
    %39 = arith.select %36, %34, %38 : vector<2x1x8xi1>, vector<2x1x8xf32>
    %40 = vector.extract_strided_slice %14 {offsets = [0, 0, 0], sizes = [2, 1, 8], strides = [1, 1, 1]} : vector<2x1x32xf32> to vector<2x1x8xf32>
    %41 = arith.mulf %39, %40 : vector<2x1x8xf32>
    %42 = arith.addf %15, %41 : vector<2x1x8xf32>
    %43 = vector.extract_strided_slice %13 {offsets = [0, 0, 8], sizes = [2, 8, 8], strides = [1, 1, 1]} : vector<2x8x32xf32> to vector<2x8x8xf32>
    %44 = vector.extract_strided_slice %11 {offsets = [0, 0, 8], sizes = [2, 8, 8], strides = [1, 1, 1]} : vector<2x8x32xf32> to vector<2x8x8xf32>
    %45 = vector.extract_strided_slice %12 {offsets = [0, 0, 8], sizes = [2, 8, 8], strides = [1, 1, 1]} : vector<2x8x32xf32> to vector<2x8x8xf32>
    "tpu.trace_start"() <{level = 10 : i32, message = "bqa,bka->bqk"}> : () -> ()
    %cst_25 = arith.constant dense<0.000000e+00> : vector<2x8x8xf32>
    %46 = tpu.matmul %43, %44, %cst_25 {dimension_numbers = #tpu.dot_dimension_numbers<[2], [2], [1], [1], [0, 0, 0, 1, 1, 1], [0], [0]>} : vector<2x8x8xf32>, vector<2x8x8xf32>, vector<2x8x8xf32> -> vector<2x8x8xf32>
    "tpu.trace_stop"() : () -> ()
    %cst_26 = arith.constant 0.353553385 : f32
    %47 = vector.broadcast %cst_26 : f32 to vector<2x8x8xf32>
    %48 = arith.mulf %46, %47 : vector<2x8x8xf32>
    %cst_27 = arith.constant dense<0xFF800000> : vector<2x8xf32>
    %49 = vector.multi_reduction <maximumf>, %48, %cst_27 [2] : vector<2x8x8xf32> to vector<2x8xf32>
    %50 = vector.shape_cast %49 : vector<2x8xf32> to vector<2x8x1xf32>
    %51 = vector.broadcast %50 : vector<2x8x1xf32> to vector<2x8x8xf32>
    %52 = arith.subf %48, %51 : vector<2x8x8xf32>
    %53 = math.exp %52 : vector<2x8x8xf32>
    %cst_28 = arith.constant dense<0.000000e+00> : vector<2x8xf32>
    %54 = vector.multi_reduction <add>, %53, %cst_28 [2] : vector<2x8x8xf32> to vector<2x8xf32>
    %55 = vector.shape_cast %54 : vector<2x8xf32> to vector<2x8x1xf32>
    %56 = tpu.reciprocal %55 {approx = true} : vector<2x8x1xf32> -> vector<2x8x1xf32>
    %57 = vector.broadcast %56 : vector<2x8x1xf32> to vector<2x8x8xf32>
    %58 = arith.mulf %53, %57 : vector<2x8x8xf32>
    %cst_29 = arith.constant dense<0.000000e+00> : vector<2x8xf32>
    %59 = vector.multi_reduction <add>, %58, %cst_29 [1] : vector<2x8x8xf32> to vector<2x8xf32>
    %60 = vector.shape_cast %59 : vector<2x8xf32> to vector<2x1x8xf32>
    "tpu.trace_start"() <{level = 10 : i32, message = "bqs,bsa->bqa"}> : () -> ()
    %cst_30 = arith.constant dense<0.000000e+00> : vector<2x1x8xf32>
    %61 = tpu.matmul %60, %45, %cst_30 {dimension_numbers = #tpu.dot_dimension_numbers<[2], [1], [1], [2], [0, 0, 0, 1, 1, 2], [0], [0]>} : vector<2x1x8xf32>, vector<2x8x8xf32>, vector<2x1x8xf32> -> vector<2x1x8xf32>
    %cst_31 = arith.constant 0.000000e+00 : f32
    "tpu.trace_stop"() : () -> ()
    %62 = vector.broadcast %cst_31 : f32 to vector<2x1x8xf32>
    %63 = arith.cmpf ogt, %61, %62 : vector<2x1x8xf32>
    %cst_32 = arith.constant 0.00999999977 : f32
    %64 = vector.broadcast %cst_32 : f32 to vector<2x1x8xf32>
    %65 = arith.mulf %64, %61 : vector<2x1x8xf32>
    %66 = arith.select %63, %61, %65 : vector<2x1x8xi1>, vector<2x1x8xf32>
    %67 = vector.extract_strided_slice %14 {offsets = [0, 0, 8], sizes = [2, 1, 8], strides = [1, 1, 1]} : vector<2x1x32xf32> to vector<2x1x8xf32>
    %68 = arith.mulf %66, %67 : vector<2x1x8xf32>
    %69 = arith.addf %42, %68 : vector<2x1x8xf32>
    %70 = vector.extract_strided_slice %13 {offsets = [0, 0, 16], sizes = [2, 8, 8], strides = [1, 1, 1]} : vector<2x8x32xf32> to vector<2x8x8xf32>
    %71 = vector.extract_strided_slice %11 {offsets = [0, 0, 16], sizes = [2, 8, 8], strides = [1, 1, 1]} : vector<2x8x32xf32> to vector<2x8x8xf32>
    %72 = vector.extract_strided_slice %12 {offsets = [0, 0, 16], sizes = [2, 8, 8], strides = [1, 1, 1]} : vector<2x8x32xf32> to vector<2x8x8xf32>
    "tpu.trace_start"() <{level = 10 : i32, message = "bqa,bka->bqk"}> : () -> ()
    %cst_33 = arith.constant dense<0.000000e+00> : vector<2x8x8xf32>
    %73 = tpu.matmul %70, %71, %cst_33 {dimension_numbers = #tpu.dot_dimension_numbers<[2], [2], [1], [1], [0, 0, 0, 1, 1, 1], [0], [0]>} : vector<2x8x8xf32>, vector<2x8x8xf32>, vector<2x8x8xf32> -> vector<2x8x8xf32>
    "tpu.trace_stop"() : () -> ()
    %cst_34 = arith.constant 0.353553385 : f32
    %74 = vector.broadcast %cst_34 : f32 to vector<2x8x8xf32>
    %75 = arith.mulf %73, %74 : vector<2x8x8xf32>
    %cst_35 = arith.constant dense<0xFF800000> : vector<2x8xf32>
    %76 = vector.multi_reduction <maximumf>, %75, %cst_35 [2] : vector<2x8x8xf32> to vector<2x8xf32>
    %77 = vector.shape_cast %76 : vector<2x8xf32> to vector<2x8x1xf32>
    %78 = vector.broadcast %77 : vector<2x8x1xf32> to vector<2x8x8xf32>
    %79 = arith.subf %75, %78 : vector<2x8x8xf32>
    %80 = math.exp %79 : vector<2x8x8xf32>
    %cst_36 = arith.constant dense<0.000000e+00> : vector<2x8xf32>
    %81 = vector.multi_reduction <add>, %80, %cst_36 [2] : vector<2x8x8xf32> to vector<2x8xf32>
    %82 = vector.shape_cast %81 : vector<2x8xf32> to vector<2x8x1xf32>
    %83 = tpu.reciprocal %82 {approx = true} : vector<2x8x1xf32> -> vector<2x8x1xf32>
    %84 = vector.broadcast %83 : vector<2x8x1xf32> to vector<2x8x8xf32>
    %85 = arith.mulf %80, %84 : vector<2x8x8xf32>
    %cst_37 = arith.constant dense<0.000000e+00> : vector<2x8xf32>
    %86 = vector.multi_reduction <add>, %85, %cst_37 [1] : vector<2x8x8xf32> to vector<2x8xf32>
    %87 = vector.shape_cast %86 : vector<2x8xf32> to vector<2x1x8xf32>
    "tpu.trace_start"() <{level = 10 : i32, message = "bqs,bsa->bqa"}> : () -> ()
    %cst_38 = arith.constant dense<0.000000e+00> : vector<2x1x8xf32>
    %88 = tpu.matmul %87, %72, %cst_38 {dimension_numbers = #tpu.dot_dimension_numbers<[2], [1], [1], [2], [0, 0, 0, 1, 1, 2], [0], [0]>} : vector<2x1x8xf32>, vector<2x8x8xf32>, vector<2x1x8xf32> -> vector<2x1x8xf32>
    %cst_39 = arith.constant 0.000000e+00 : f32
    "tpu.trace_stop"() : () -> ()
    %89 = vector.broadcast %cst_39 : f32 to vector<2x1x8xf32>
    %90 = arith.cmpf ogt, %88, %89 : vector<2x1x8xf32>
    %cst_40 = arith.constant 0.00999999977 : f32
    %91 = vector.broadcast %cst_40 : f32 to vector<2x1x8xf32>
    %92 = arith.mulf %91, %88 : vector<2x1x8xf32>
    %93 = arith.select %90, %88, %92 : vector<2x1x8xi1>, vector<2x1x8xf32>
    %94 = vector.extract_strided_slice %14 {offsets = [0, 0, 16], sizes = [2, 1, 8], strides = [1, 1, 1]} : vector<2x1x32xf32> to vector<2x1x8xf32>
    %95 = arith.mulf %93, %94 : vector<2x1x8xf32>
    %96 = arith.addf %69, %95 : vector<2x1x8xf32>
    %97 = vector.extract_strided_slice %13 {offsets = [0, 0, 24], sizes = [2, 8, 8], strides = [1, 1, 1]} : vector<2x8x32xf32> to vector<2x8x8xf32>
    %98 = vector.extract_strided_slice %11 {offsets = [0, 0, 24], sizes = [2, 8, 8], strides = [1, 1, 1]} : vector<2x8x32xf32> to vector<2x8x8xf32>
    %99 = vector.extract_strided_slice %12 {offsets = [0, 0, 24], sizes = [2, 8, 8], strides = [1, 1, 1]} : vector<2x8x32xf32> to vector<2x8x8xf32>
    "tpu.trace_start"() <{level = 10 : i32, message = "bqa,bka->bqk"}> : () -> ()
    %cst_41 = arith.constant dense<0.000000e+00> : vector<2x8x8xf32>
    %100 = tpu.matmul %97, %98, %cst_41 {dimension_numbers = #tpu.dot_dimension_numbers<[2], [2], [1], [1], [0, 0, 0, 1, 1, 1], [0], [0]>} : vector<2x8x8xf32>, vector<2x8x8xf32>, vector<2x8x8xf32> -> vector<2x8x8xf32>
    "tpu.trace_stop"() : () -> ()
    %cst_42 = arith.constant 0.353553385 : f32
    %101 = vector.broadcast %cst_42 : f32 to vector<2x8x8xf32>
    %102 = arith.mulf %100, %101 : vector<2x8x8xf32>
    %cst_43 = arith.constant dense<0xFF800000> : vector<2x8xf32>
    %103 = vector.multi_reduction <maximumf>, %102, %cst_43 [2] : vector<2x8x8xf32> to vector<2x8xf32>
    %104 = vector.shape_cast %103 : vector<2x8xf32> to vector<2x8x1xf32>
    %105 = vector.broadcast %104 : vector<2x8x1xf32> to vector<2x8x8xf32>
    %106 = arith.subf %102, %105 : vector<2x8x8xf32>
    %107 = math.exp %106 : vector<2x8x8xf32>
    %cst_44 = arith.constant dense<0.000000e+00> : vector<2x8xf32>
    %108 = vector.multi_reduction <add>, %107, %cst_44 [2] : vector<2x8x8xf32> to vector<2x8xf32>
    %109 = vector.shape_cast %108 : vector<2x8xf32> to vector<2x8x1xf32>
    %110 = tpu.reciprocal %109 {approx = true} : vector<2x8x1xf32> -> vector<2x8x1xf32>
    %111 = vector.broadcast %110 : vector<2x8x1xf32> to vector<2x8x8xf32>
    %112 = arith.mulf %107, %111 : vector<2x8x8xf32>
    %cst_45 = arith.constant dense<0.000000e+00> : vector<2x8xf32>
    %113 = vector.multi_reduction <add>, %112, %cst_45 [1] : vector<2x8x8xf32> to vector<2x8xf32>
    %114 = vector.shape_cast %113 : vector<2x8xf32> to vector<2x1x8xf32>
    "tpu.trace_start"() <{level = 10 : i32, message = "bqs,bsa->bqa"}> : () -> ()
    %cst_46 = arith.constant dense<0.000000e+00> : vector<2x1x8xf32>
    %115 = tpu.matmul %114, %99, %cst_46 {dimension_numbers = #tpu.dot_dimension_numbers<[2], [1], [1], [2], [0, 0, 0, 1, 1, 2], [0], [0]>} : vector<2x1x8xf32>, vector<2x8x8xf32>, vector<2x1x8xf32> -> vector<2x1x8xf32>
    %cst_47 = arith.constant 0.000000e+00 : f32
    "tpu.trace_stop"() : () -> ()
    %116 = vector.broadcast %cst_47 : f32 to vector<2x1x8xf32>
    %117 = arith.cmpf ogt, %115, %116 : vector<2x1x8xf32>
    %cst_48 = arith.constant 0.00999999977 : f32
    %118 = vector.broadcast %cst_48 : f32 to vector<2x1x8xf32>
    %119 = arith.mulf %118, %115 : vector<2x1x8xf32>
    %120 = arith.select %117, %115, %119 : vector<2x1x8xi1>, vector<2x1x8xf32>
    %121 = vector.extract_strided_slice %14 {offsets = [0, 0, 24], sizes = [2, 1, 8], strides = [1, 1, 1]} : vector<2x1x32xf32> to vector<2x1x8xf32>
    %122 = arith.mulf %120, %121 : vector<2x1x8xf32>
    %123 = arith.addf %96, %122 : vector<2x1x8xf32>
    %cst_49 = arith.constant dense<0.000000e+00> : vector<2x1xf32>
    %124 = vector.multi_reduction <add>, %123, %cst_49 [2] : vector<2x1x8xf32> to vector<2x1xf32>
    %c0_50 = arith.constant 0 : index
    %c0_51 = arith.constant 0 : index
    %125 = vector.load %arg7[%c0_50, %c0_51] : memref<2x1xf32, #tpu.memory_space<vmem>>, vector<2x1xf32>
    tpu.vector_store %arg7[%c0_50, %c0_51], %124 {strides = array<i32>} : memref<2x1xf32, #tpu.memory_space<vmem>>, vector<2x1xf32>,
    return
  }
}

</mosaic_0001>

<llo_original>
// kernel: tpu_custom_call.1
$region0: #{tpu_custom_call.1}
  #allocation0 [shape = 'u32[]', space=smem, size = 0x4, offset = 0x4, fixed_abs, tag = 'smem constant byte address 0x4 - core index']
  #allocation1 [shape = 'u32[144,128]{1,0:T(1,128)}', space=vmem, size = 0x12000, scoped, tag = 'internal scratch']
  %s0 = inlined_call_operand.vmem [shape: f32[2,8,32], index: 0, kind: input, shape index: {}]
  %s1 = inlined_call_operand.vmem [shape: f32[16,8], index: 1, kind: input, shape index: {}]
  %s2 = inlined_call_operand.vmem [shape: f32[8,32], index: 2, kind: input, shape index: {}]
  %s3 = inlined_call_operand.vmem [shape: f32[1,32], index: 3, kind: input, shape index: {}]
  %s4 = inlined_call_operand.hbm [shape: f32[8,32], index: 4, kind: input, shape index: {}]
  %s5 = inlined_call_operand.vmem [shape: f32[1,32], index: 5, kind: input, shape index: {}]
  %s6 = inlined_call_operand.vmem [shape: f32[2,1,32], index: 6, kind: input, shape index: {}]
  %s7 = inlined_call_operand.vmem [shape: f32[2,1], index: 7, kind: output, shape index: {}]
  %s8 = sld [smem:[#allocation0]]
  $region42: #{tpu_custom_call.1} parent=0
    _
  %s10 = ssub.s32 1, %s8
  %s11 = scalar_select 0, %s10, %s8
  $region1: #{tpu_custom_call.1} parent=0
    #allocation2 [shape = 'u8[4096]{0}', space=vmem, size = 0x1000, scoped, tag = 'input window, operand 4, single buffered']
    #allocation3 [shape = 's32[1]{0}', space=sflag, size = 0x4, scoped, tag = 'scoped memory for tpu_custom_call.1']
    %12 = vsyncpa [#allocation3], 0
    // Predicated region
    $region2: #{tpu_custom_call.1} parent=1 // pred_check
      _
    $region3: #{tpu_custom_call.1} parent=1 // pred_check_branch
      %14 = sbr.rel (0) target = $region5
    $region4: #{tpu_custom_call.1} parent=1 // pred_region
      _
    $region5: #{tpu_custom_call.1} parent=1 // pred_fallthru
      _
    // Predicated region
    $region6: #{tpu_custom_call.1} parent=1 // pred_check
      _
    $region7: #{tpu_custom_call.1} parent=1 // pred_check_branch
      %16 = sbr.rel (0) target = $region9
    $region8: #{tpu_custom_call.1} parent=1 // pred_region
      _
    $region9: #{tpu_custom_call.1} parent=1 // pred_fallthru
      _
    // Predicated region
    $region10: #{tpu_custom_call.1} parent=1 // pred_check
      _
    $region11: #{tpu_custom_call.1} parent=1 // pred_check_branch
      %18 = sbr.rel (0) target = $region13
    $region12: #{tpu_custom_call.1} parent=1 // pred_region
      _
    $region13: #{tpu_custom_call.1} parent=1 // pred_fallthru
      _
    // Predicated region
    $region14: #{tpu_custom_call.1} parent=1 // pred_check
      _
    $region15: #{tpu_custom_call.1} parent=1 // pred_check_branch
      %20 = sbr.rel (0) target = $region17
    $region16: #{tpu_custom_call.1} parent=1 // pred_region
      _
    $region17: #{tpu_custom_call.1} parent=1 // pred_fallthru
      _
    // Predicated region
    $region18: #{tpu_custom_call.1} parent=1 // pred_check
      _
    $region19: #{tpu_custom_call.1} parent=1 // pred_check_branch
      %22 = sbr.rel (0) target = $region21
    $region20: #{tpu_custom_call.1} parent=1 // pred_region
      %s24 = ssub.s32 128, 128
      %25 = vsyncadd [#allocation3], %s24
      %s27 = sshll.u32 [#allocation2], 4
      %s28 = int_to_ptr.vmem [resolvable:$true] %s27
      %30 = dma.hbm_to_vmem [thread:$0]  %s4, 128, %s28, [#allocation3]
    $region21: #{tpu_custom_call.1} parent=1 // pred_fallthru
      _
    // Predicated region
    $region22: #{tpu_custom_call.1} parent=1 // pred_check
      _
    $region23: #{tpu_custom_call.1} parent=1 // pred_check_branch
      %32 = sbr.rel (0) target = $region25
    $region24: #{tpu_custom_call.1} parent=1 // pred_region
      _
    $region25: #{tpu_custom_call.1} parent=1 // pred_fallthru
      _
    // Predicated region
    $region26: #{tpu_custom_call.1} parent=1 // pred_check
      _
    $region27: #{tpu_custom_call.1} parent=1 // pred_check_branch
      %34 = sbr.rel (0) target = $region29
    $region28: #{tpu_custom_call.1} parent=1 // pred_region
      _
    $region29: #{tpu_custom_call.1} parent=1 // pred_fallthru
      _
    // Predicated region
    $region30: #{tpu_custom_call.1} parent=1 // pred_check
      _
    $region31: #{tpu_custom_call.1} parent=1 // pred_check_branch
      %36 = sbr.rel (0) target = $region33
    $region32: #{tpu_custom_call.1} parent=1 // pred_region
      %37 = dma.done [#allocation3], 128
    $region33: #{tpu_custom_call.1} parent=1 // pred_fallthru
      _
    %v38 = vld [vmem:[%s1] sm:$0xff]
    %v39 = vld [vmem:[%s1 + $0x8] sm:$0xff]
    %v40 = vld [vmem:[%s2] sm:$0xff]
    %v41 = vld [vmem:[%s3] sm:$0x1]
    %v43 = vlaneseq
    %v44 = vshrl.u32 %v43, 7
    %v45 = vsub.s32 0, %v44
    %v46 = vrot.slane %v41, %v45
    %vm48 = vcmask 64512
    %v50 = vsel %vm48, %v38, 0
    %v53 = vsel %vm48, %v39, 0
    %55 = vmatprep.subr.mxu0 0.0
    %56 = vmatpush1.msra.mxu0 0.0
    %57 = vmatprep.subr.mxu0 0.0
    %58 = vmatpush1.msra.mxu0 0.0
    %59 = vmatprep.subr.mxu0 0.0
    %60 = vmatpush1.msra.mxu0 0.0
    %61 = vmatprep.subr.mxu0 0.0
    %62 = vmatpush1.msra.mxu0 0.0
    %63 = vmatprep.subr.mxu0 0.0
    %64 = vmatpush1.msra.mxu0 0.0
    %65 = vmatprep.subr.mxu0 0.0
    %66 = vmatpush1.msra.mxu0 0.0
    %67 = vmatprep.subr.mxu0 0.0
    %68 = vmatpush1.msra.mxu0 0.0
    %69 = vmatprep.subr.mxu0 0.0
    %70 = vmatpush1.msra.mxu0 0.0
    %71 = vmatprep.subr.mxu0 0.0
    %72 = vmatpush1.msra.mxu0 0.0
    %73 = vmatprep.subr.mxu0 0.0
    %74 = vmatpush1.msra.mxu0 0.0
    %75 = vmatprep.subr.mxu0 0.0
    %76 = vmatpush1.msra.mxu0 0.0
    %77 = vmatprep.subr.mxu0 0.0
    %78 = vmatpush1.msra.mxu0 0.0
    %79 = vmatprep.subr.mxu0 0.0
    %80 = vmatpush1.msra.mxu0 0.0
    %81 = vmatprep.subr.mxu0 0.0
    %82 = vmatpush1.msra.mxu0 0.0
    %83 = vmatprep.subr.mxu0 0.0
    %84 = vmatpush1.msra.mxu0 0.0
    %85 = vmatprep.subr.mxu0 0.0
    %86 = vmatpush1.msra.mxu0 %v40
    %87 = vmatprep.subr.mxu0 0.0
    %88 = vmatpush2.msra.mxu0 0.0
    %89 = vmatprep.subr.mxu0 0.0
    %90 = vmatpush2.msra.mxu0 0.0
    %91 = vmatprep.subr.mxu0 0.0
    %92 = vmatpush2.msra.mxu0 0.0
    %93 = vmatprep.subr.mxu0 0.0
    %94 = vmatpush2.msra.mxu0 0.0
    %95 = vmatprep.subr.mxu0 0.0
    %96 = vmatpush2.msra.mxu0 0.0
    %97 = vmatprep.subr.mxu0 0.0
    %98 = vmatpush2.msra.mxu0 0.0
    %99 = vmatprep.subr.mxu0 0.0
    %100 = vmatpush2.msra.mxu0 0.0
    %101 = vmatprep.subr.mxu0 0.0
    %102 = vmatpush2.msra.mxu0 0.0
    %103 = vmatprep.subr.mxu0 0.0
    %104 = vmatpush2.msra.mxu0 0.0
    %105 = vmatprep.subr.mxu0 0.0
    %106 = vmatpush2.msra.mxu0 0.0
    %107 = vmatprep.subr.mxu0 0.0
    %108 = vmatpush2.msra.mxu0 0.0
    %109 = vmatprep.subr.mxu0 0.0
    %110 = vmatpush2.msra.mxu0 0.0
    %111 = vmatprep.subr.mxu0 0.0
    %112 = vmatpush2.msra.mxu0 0.0
    %113 = vmatprep.subr.mxu0 0.0
    %114 = vmatpush2.msra.mxu0 0.0
    %115 = vmatprep.subr.mxu0 0.0
    %116 = vmatpush2.msra.mxu0 0.0
    %117 = vmatprep.subr.mxu0 0.0
    %118 = vmatpush2.msra.mxu0 0.0
    %119 = vmatprep.mubr.f32.mxu0 0.0
    %120 = vmatmul.mubr.f32.gmra.mxu0 %v50
    %v121 = vpop.f32.mrf.mxu0
    %v122 = vadd.f32 %v46, %v121
    %v123 = vpop.f32.mrf.mxu0
    %124 = vmatprep.mubr.f32.mxu0 0.0
    %125 = vmatmul.mubr.f32.gmra.mxu0 %v53
    %v126 = vpop.f32.mrf.mxu0
    %v127 = vadd.f32 %v46, %v126
    %v128 = vpop.f32.mrf.mxu0
    %129 = vdwg.mxu0
    %v130 = vld [vmem:[#allocation2] sm:$0xff]
    %v131 = vld [vmem:[%s5] sm:$0x1]
    %v133 = vlaneseq
    %v134 = vshrl.u32 %v133, 7
    %v135 = vsub.s32 0, %v134
    %v136 = vrot.slane %v131, %v135
    %138 = vmatprep.subr.mxu0 0.0
    %139 = vmatpush1.msra.mxu0 0.0
    %140 = vmatprep.subr.mxu0 0.0
    %141 = vmatpush1.msra.mxu0 0.0
    %142 = vmatprep.subr.mxu0 0.0
    %143 = vmatpush1.msra.mxu0 0.0
    %144 = vmatprep.subr.mxu0 0.0
    %145 = vmatpush1.msra.mxu0 0.0
    %146 = vmatprep.subr.mxu0 0.0
    %147 = vmatpush1.msra.mxu0 0.0
    %148 = vmatprep.subr.mxu0 0.0
    %149 = vmatpush1.msra.mxu0 0.0
    %150 = vmatprep.subr.mxu0 0.0
    %151 = vmatpush1.msra.mxu0 0.0
    %152 = vmatprep.subr.mxu0 0.0
    %153 = vmatpush1.msra.mxu0 0.0
    %154 = vmatprep.subr.mxu0 0.0
    %155 = vmatpush1.msra.mxu0 0.0
    %156 = vmatprep.subr.mxu0 0.0
    %157 = vmatpush1.msra.mxu0 0.0
    %158 = vmatprep.subr.mxu0 0.0
    %159 = vmatpush1.msra.mxu0 0.0
    %160 = vmatprep.subr.mxu0 0.0
    %161 = vmatpush1.msra.mxu0 0.0
    %162 = vmatprep.subr.mxu0 0.0
    %163 = vmatpush1.msra.mxu0 0.0
    %164 = vmatprep.subr.mxu0 0.0
    %165 = vmatpush1.msra.mxu0 0.0
    %166 = vmatprep.subr.mxu0 0.0
    %167 = vmatpush1.msra.mxu0 0.0
    %168 = vmatprep.subr.mxu0 0.0
    %169 = vmatpush1.msra.mxu0 %v130
    %170 = vmatprep.subr.mxu0 0.0
    %171 = vmatpush2.msra.mxu0 0.0
    %172 = vmatprep.subr.mxu0 0.0
    %173 = vmatpush2.msra.mxu0 0.0
    %174 = vmatprep.subr.mxu0 0.0
    %175 = vmatpush2.msra.mxu0 0.0
    %176 = vmatprep.subr.mxu0 0.0
    %177 = vmatpush2.msra.mxu0 0.0
    %178 = vmatprep.subr.mxu0 0.0
    %179 = vmatpush2.msra.mxu0 0.0
    %180 = vmatprep.subr.mxu0 0.0
    %181 = vmatpush2.msra.mxu0 0.0
    %182 = vmatprep.subr.mxu0 0.0
    %183 = vmatpush2.msra.mxu0 0.0
    %184 = vmatprep.subr.mxu0 0.0
    %185 = vmatpush2.msra.mxu0 0.0
    %186 = vmatprep.subr.mxu0 0.0
    %187 = vmatpush2.msra.mxu0 0.0
    %188 = vmatprep.subr.mxu0 0.0
    %189 = vmatpush2.msra.mxu0 0.0
    %190 = vmatprep.subr.mxu0 0.0
    %191 = vmatpush2.msra.mxu0 0.0
    %192 = vmatprep.subr.mxu0 0.0
    %193 = vmatpush2.msra.mxu0 0.0
    %194 = vmatprep.subr.mxu0 0.0
    %195 = vmatpush2.msra.mxu0 0.0
    %196 = vmatprep.subr.mxu0 0.0
    %197 = vmatpush2.msra.mxu0 0.0
    %198 = vmatprep.subr.mxu0 0.0
    %199 = vmatpush2.msra.mxu0 0.0
    %200 = vmatprep.subr.mxu0 0.0
    %201 = vmatpush2.msra.mxu0 0.0
    %202 = vmatprep.mubr.f32.mxu0 0.0
    %203 = vmatmul.mubr.f32.gmra.mxu0 %v50
    %v204 = vpop.f32.mrf.mxu0
    %v205 = vadd.f32 %v136, %v204
    %v206 = vpop.f32.mrf.mxu0
    %207 = vmatprep.mubr.f32.mxu0 0.0
    %208 = vmatmul.mubr.f32.gmra.mxu0 %v53
    %v209 = vpop.f32.mrf.mxu0
    %v210 = vadd.f32 %v136, %v209
    %v211 = vpop.f32.mrf.mxu0
    %212 = vdwg.mxu0
    %v213 = vld [vmem:[%s0] sm:$0xff]
    %v214 = vld [vmem:[%s0 + $0x8] sm:$0xff]
    %v215 = vld [vmem:[%s6] sm:$0x1]
    %v216 = vld [vmem:[%s6 + $0x1] sm:$0x1]
    %v218 = vsel %vm48, %v213, 0
    %v221 = vsel %vm48, %v122, 0
    %223 = vmatprep.subr.mxu0 0.0
    %224 = vmatpush1.xpose.msra.mxu0 0.0
    %225 = vmatprep.subr.mxu0 0.0
    %226 = vmatpush1.xpose.msra.mxu0 0.0
    %227 = vmatprep.subr.mxu0 0.0
    %228 = vmatpush1.xpose.msra.mxu0 0.0
    %229 = vmatprep.subr.mxu0 0.0
    %230 = vmatpush1.xpose.msra.mxu0 0.0
    %231 = vmatprep.subr.mxu0 0.0
    %232 = vmatpush1.xpose.msra.mxu0 0.0
    %233 = vmatprep.subr.mxu0 0.0
    %234 = vmatpush1.xpose.msra.mxu0 0.0
    %235 = vmatprep.subr.mxu0 0.0
    %236 = vmatpush1.xpose.msra.mxu0 0.0
    %237 = vmatprep.subr.mxu0 0.0
    %238 = vmatpush1.xpose.msra.mxu0 0.0
    %239 = vmatprep.subr.mxu0 0.0
    %240 = vmatpush1.xpose.msra.mxu0 0.0
    %241 = vmatprep.subr.mxu0 0.0
    %242 = vmatpush1.xpose.msra.mxu0 0.0
    %243 = vmatprep.subr.mxu0 0.0
    %244 = vmatpush1.xpose.msra.mxu0 0.0
    %245 = vmatprep.subr.mxu0 0.0
    %246 = vmatpush1.xpose.msra.mxu0 0.0
    %247 = vmatprep.subr.mxu0 0.0
    %248 = vmatpush1.xpose.msra.mxu0 0.0
    %249 = vmatprep.subr.mxu0 0.0
    %250 = vmatpush1.xpose.msra.mxu0 0.0
    %251 = vmatprep.subr.mxu0 0.0
    %252 = vmatpush1.xpose.msra.mxu0 0.0
    %253 = vmatprep.subr.mxu0 0.0
    %254 = vmatpush1.xpose.msra.mxu0 %v221
    %255 = vmatprep.subr.mxu0 0.0
    %256 = vmatpush2.xpose.msra.mxu0 0.0
    %257 = vmatprep.subr.mxu0 0.0
    %258 = vmatpush2.xpose.msra.mxu0 0.0
    %259 = vmatprep.subr.mxu0 0.0
    %260 = vmatpush2.xpose.msra.mxu0 0.0
    %261 = vmatprep.subr.mxu0 0.0
    %262 = vmatpush2.xpose.msra.mxu0 0.0
    %263 = vmatprep.subr.mxu0 0.0
    %264 = vmatpush2.xpose.msra.mxu0 0.0
    %265 = vmatprep.subr.mxu0 0.0
    %266 = vmatpush2.xpose.msra.mxu0 0.0
    %267 = vmatprep.subr.mxu0 0.0
    %268 = vmatpush2.xpose.msra.mxu0 0.0
    %269 = vmatprep.subr.mxu0 0.0
    %270 = vmatpush2.xpose.msra.mxu0 0.0
    %271 = vmatprep.subr.mxu0 0.0
    %272 = vmatpush2.xpose.msra.mxu0 0.0
    %273 = vmatprep.subr.mxu0 0.0
    %274 = vmatpush2.xpose.msra.mxu0 0.0
    %275 = vmatprep.subr.mxu0 0.0
    %276 = vmatpush2.xpose.msra.mxu0 0.0
    %277 = vmatprep.subr.mxu0 0.0
    %278 = vmatpush2.xpose.msra.mxu0 0.0
    %279 = vmatprep.subr.mxu0 0.0
    %280 = vmatpush2.xpose.msra.mxu0 0.0
    %281 = vmatprep.subr.mxu0 0.0
    %282 = vmatpush2.xpose.msra.mxu0 0.0
    %283 = vmatprep.subr.mxu0 0.0
    %284 = vmatpush2.xpose.msra.mxu0 0.0
    %285 = vmatprep.subr.mxu0 0.0
    %286 = vmatpush2.xpose.msra.mxu0 0.0
    %287 = vmatprep.mubr.f32.mxu0 0.0
    %288 = vmatmul.mubr.f32.gmra.mxu0 %v218
    %v289 = vpop.f32.mrf.mxu0
    %v290 = vadd.f32 0.0, %v289
    %v291 = vpop.f32.mrf.mxu0
    %292 = vdwg.mxu0
    %v294 = vsel %vm48, %v214, 0
    %v297 = vsel %vm48, %v127, 0
    %299 = vmatprep.subr.mxu0 0.0
    %300 = vmatpush1.xpose.msra.mxu0 0.0
    %301 = vmatprep.subr.mxu0 0.0
    %302 = vmatpush1.xpose.msra.mxu0 0.0
    %303 = vmatprep.subr.mxu0 0.0
    %304 = vmatpush1.xpose.msra.mxu0 0.0
    %305 = vmatprep.subr.mxu0 0.0
    %306 = vmatpush1.xpose.msra.mxu0 0.0
    %307 = vmatprep.subr.mxu0 0.0
    %308 = vmatpush1.xpose.msra.mxu0 0.0
    %309 = vmatprep.subr.mxu0 0.0
    %310 = vmatpush1.xpose.msra.mxu0 0.0
    %311 = vmatprep.subr.mxu0 0.0
    %312 = vmatpush1.xpose.msra.mxu0 0.0
    %313 = vmatprep.subr.mxu0 0.0
    %314 = vmatpush1.xpose.msra.mxu0 0.0
    %315 = vmatprep.subr.mxu0 0.0
    %316 = vmatpush1.xpose.msra.mxu0 0.0
    %317 = vmatprep.subr.mxu0 0.0
    %318 = vmatpush1.xpose.msra.mxu0 0.0
    %319 = vmatprep.subr.mxu0 0.0
    %320 = vmatpush1.xpose.msra.mxu0 0.0
    %321 = vmatprep.subr.mxu0 0.0
    %322 = vmatpush1.xpose.msra.mxu0 0.0
    %323 = vmatprep.subr.mxu0 0.0
    %324 = vmatpush1.xpose.msra.mxu0 0.0
    %325 = vmatprep.subr.mxu0 0.0
    %326 = vmatpush1.xpose.msra.mxu0 0.0
    %327 = vmatprep.subr.mxu0 0.0
    %328 = vmatpush1.xpose.msra.mxu0 0.0
    %329 = vmatprep.subr.mxu0 0.0
    %330 = vmatpush1.xpose.msra.mxu0 %v297
    %331 = vmatprep.subr.mxu0 0.0
    %332 = vmatpush2.xpose.msra.mxu0 0.0
    %333 = vmatprep.subr.mxu0 0.0
    %334 = vmatpush2.xpose.msra.mxu0 0.0
    %335 = vmatprep.subr.mxu0 0.0
    %336 = vmatpush2.xpose.msra.mxu0 0.0
    %337 = vmatprep.subr.mxu0 0.0
    %338 = vmatpush2.xpose.msra.mxu0 0.0
    %339 = vmatprep.subr.mxu0 0.0
    %340 = vmatpush2.xpose.msra.mxu0 0.0
    %341 = vmatprep.subr.mxu0 0.0
    %342 = vmatpush2.xpose.msra.mxu0 0.0
    %343 = vmatprep.subr.mxu0 0.0
    %344 = vmatpush2.xpose.msra.mxu0 0.0
    %345 = vmatprep.subr.mxu0 0.0
    %346 = vmatpush2.xpose.msra.mxu0 0.0
    %347 = vmatprep.subr.mxu0 0.0
    %348 = vmatpush2.xpose.msra.mxu0 0.0
    %349 = vmatprep.subr.mxu0 0.0
    %350 = vmatpush2.xpose.msra.mxu0 0.0
    %351 = vmatprep.subr.mxu0 0.0
    %352 = vmatpush2.xpose.msra.mxu0 0.0
    %353 = vmatprep.subr.mxu0 0.0
    %354 = vmatpush2.xpose.msra.mxu0 0.0
    %355 = vmatprep.subr.mxu0 0.0
    %356 = vmatpush2.xpose.msra.mxu0 0.0
    %357 = vmatprep.subr.mxu0 0.0
    %358 = vmatpush2.xpose.msra.mxu0 0.0
    %359 = vmatprep.subr.mxu0 0.0
    %360 = vmatpush2.xpose.msra.mxu0 0.0
    %361 = vmatprep.subr.mxu0 0.0
    %362 = vmatpush2.xpose.msra.mxu0 0.0
    %363 = vmatprep.mubr.f32.mxu0 0.0
    %364 = vmatmul.mubr.f32.gmra.mxu0 %v294
    %v365 = vpop.f32.mrf.mxu0
    %v366 = vadd.f32 0.0, %v365
    %v367 = vpop.f32.mrf.mxu0
    %368 = vdwg.mxu0
    %v369 = vmul.f32 %v290, 0.35355338
    %v370 = vmul.f32 %v366, 0.35355338
    %v371 = vsel %vm48, %v369, -inf
    %372 = vmax.xlane.f32.xlu0 %v371
    %v373 = vpop.xlane.xlu0 %372
    %v374 = vsel %vm48, %v370, -inf
    %375 = vmax.xlane.f32.xlu0 %v374
    %v376 = vpop.xlane.xlu0 %375
    %v377 = vsub.f32 %v369, %v373
    %v378 = vsub.f32 %v370, %v376
    %v379 = vmul.f32 %v377, 1.442695
    %v380 = vpow.pop %v379
    %v381 = vmul.f32 %v378, 1.442695
    %v382 = vpow.pop %v381
    %v383 = vsel %vm48, %v380, 0.0
    %384 = vadd.xlane.f32.xlu0 %v383
    %v385 = vpop.xlane.xlu0 %384
    %v386 = vsel %vm48, %v382, 0.0
    %387 = vadd.xlane.f32.xlu0 %v386
    %v388 = vpop.xlane.xlu0 %387
    %v389 = vrcp.pop %v385
    %v390 = vrcp.pop %v388
    %v391 = vmul.f32 %v380, %v389
    %v392 = vmul.f32 %v382, %v390
    %v393 = vsel %vm48, %v391, 0.0
    %v394 = vrot.slane %v393, 4
    %v395 = vadd.f32 %v393, %v394
    %v396 = vrot.slane %v395, 2
    %v397 = vadd.f32 %v395, %v396
    %v398 = vrot.slane %v397, 1
    %v399 = vadd.f32 %v397, %v398
    %v400 = vsel %vm48, %v392, 0.0
    %v401 = vrot.slane %v400, 4
    %v402 = vadd.f32 %v400, %v401
    %v403 = vrot.slane %v402, 2
    %v404 = vadd.f32 %v402, %v403
    %v405 = vrot.slane %v404, 1
    %v406 = vadd.f32 %v404, %v405
    %v408 = vsel %vm48, %v399, 0
    %410 = vmatprep.subr.mxu0 0.0
    %411 = vmatpush1.msra.mxu0 0.0
    %412 = vmatprep.subr.mxu0 0.0
    %413 = vmatpush1.msra.mxu0 0.0
    %414 = vmatprep.subr.mxu0 0.0
    %415 = vmatpush1.msra.mxu0 0.0
    %416 = vmatprep.subr.mxu0 0.0
    %417 = vmatpush1.msra.mxu0 0.0
    %418 = vmatprep.subr.mxu0 0.0
    %419 = vmatpush1.msra.mxu0 0.0
    %420 = vmatprep.subr.mxu0 0.0
    %421 = vmatpush1.msra.mxu0 0.0
    %422 = vmatprep.subr.mxu0 0.0
    %423 = vmatpush1.msra.mxu0 0.0
    %424 = vmatprep.subr.mxu0 0.0
    %425 = vmatpush1.msra.mxu0 0.0
    %426 = vmatprep.subr.mxu0 0.0
    %427 = vmatpush1.msra.mxu0 0.0
    %428 = vmatprep.subr.mxu0 0.0
    %429 = vmatpush1.msra.mxu0 0.0
    %430 = vmatprep.subr.mxu0 0.0
    %431 = vmatpush1.msra.mxu0 0.0
    %432 = vmatprep.subr.mxu0 0.0
    %433 = vmatpush1.msra.mxu0 0.0
    %434 = vmatprep.subr.mxu0 0.0
    %435 = vmatpush1.msra.mxu0 0.0
    %436 = vmatprep.subr.mxu0 0.0
    %437 = vmatpush1.msra.mxu0 0.0
    %438 = vmatprep.subr.mxu0 0.0
    %439 = vmatpush1.msra.mxu0 0.0
    %440 = vmatprep.subr.mxu0 0.0
    %441 = vmatpush1.msra.mxu0 %v205
    %442 = vmatprep.subr.mxu0 0.0
    %443 = vmatpush2.msra.mxu0 0.0
    %444 = vmatprep.subr.mxu0 0.0
    %445 = vmatpush2.msra.mxu0 0.0
    %446 = vmatprep.subr.mxu0 0.0
    %447 = vmatpush2.msra.mxu0 0.0
    %448 = vmatprep.subr.mxu0 0.0
    %449 = vmatpush2.msra.mxu0 0.0
    %450 = vmatprep.subr.mxu0 0.0
    %451 = vmatpush2.msra.mxu0 0.0
    %452 = vmatprep.subr.mxu0 0.0
    %453 = vmatpush2.msra.mxu0 0.0
    %454 = vmatprep.subr.mxu0 0.0
    %455 = vmatpush2.msra.mxu0 0.0
    %456 = vmatprep.subr.mxu0 0.0
    %457 = vmatpush2.msra.mxu0 0.0
    %458 = vmatprep.subr.mxu0 0.0
    %459 = vmatpush2.msra.mxu0 0.0
    %460 = vmatprep.subr.mxu0 0.0
    %461 = vmatpush2.msra.mxu0 0.0
    %462 = vmatprep.subr.mxu0 0.0
    %463 = vmatpush2.msra.mxu0 0.0
    %464 = vmatprep.subr.mxu0 0.0
    %465 = vmatpush2.msra.mxu0 0.0
    %466 = vmatprep.subr.mxu0 0.0
    %467 = vmatpush2.msra.mxu0 0.0
    %468 = vmatprep.subr.mxu0 0.0
    %469 = vmatpush2.msra.mxu0 0.0
    %470 = vmatprep.subr.mxu0 0.0
    %471 = vmatpush2.msra.mxu0 0.0
    %472 = vmatprep.subr.mxu0 0.0
    %473 = vmatpush2.msra.mxu0 0.0
    %474 = vmatprep.mubr.f32.mxu0 0.0
    %475 = vmatmul.mubr.f32.gmra.mxu0 %v408
    %v476 = vpop.f32.mrf.mxu0
    %v477 = vadd.f32 0.0, %v476
    %v478 = vpop.f32.mrf.mxu0
    %479 = vdwg.mxu0
    %v481 = vsel %vm48, %v406, 0
    %483 = vmatprep.subr.mxu0 0.0
    %484 = vmatpush1.msra.mxu0 0.0
    %485 = vmatprep.subr.mxu0 0.0
    %486 = vmatpush1.msra.mxu0 0.0
    %487 = vmatprep.subr.mxu0 0.0
    %488 = vmatpush1.msra.mxu0 0.0
    %489 = vmatprep.subr.mxu0 0.0
    %490 = vmatpush1.msra.mxu0 0.0
    %491 = vmatprep.subr.mxu0 0.0
    %492 = vmatpush1.msra.mxu0 0.0
    %493 = vmatprep.subr.mxu0 0.0
    %494 = vmatpush1.msra.mxu0 0.0
    %495 = vmatprep.subr.mxu0 0.0
    %496 = vmatpush1.msra.mxu0 0.0
    %497 = vmatprep.subr.mxu0 0.0
    %498 = vmatpush1.msra.mxu0 0.0
    %499 = vmatprep.subr.mxu0 0.0
    %500 = vmatpush1.msra.mxu0 0.0
    %501 = vmatprep.subr.mxu0 0.0
    %502 = vmatpush1.msra.mxu0 0.0
    %503 = vmatprep.subr.mxu0 0.0
    %504 = vmatpush1.msra.mxu0 0.0
    %505 = vmatprep.subr.mxu0 0.0
    %506 = vmatpush1.msra.mxu0 0.0
    %507 = vmatprep.subr.mxu0 0.0
    %508 = vmatpush1.msra.mxu0 0.0
    %509 = vmatprep.subr.mxu0 0.0
    %510 = vmatpush1.msra.mxu0 0.0
    %511 = vmatprep.subr.mxu0 0.0
    %512 = vmatpush1.msra.mxu0 0.0
    %513 = vmatprep.subr.mxu0 0.0
    %514 = vmatpush1.msra.mxu0 %v210
    %515 = vmatprep.subr.mxu0 0.0
    %516 = vmatpush2.msra.mxu0 0.0
    %517 = vmatprep.subr.mxu0 0.0
    %518 = vmatpush2.msra.mxu0 0.0
    %519 = vmatprep.subr.mxu0 0.0
    %520 = vmatpush2.msra.mxu0 0.0
    %521 = vmatprep.subr.mxu0 0.0
    %522 = vmatpush2.msra.mxu0 0.0
    %523 = vmatprep.subr.mxu0 0.0
    %524 = vmatpush2.msra.mxu0 0.0
    %525 = vmatprep.subr.mxu0 0.0
    %526 = vmatpush2.msra.mxu0 0.0
    %527 = vmatprep.subr.mxu0 0.0
    %528 = vmatpush2.msra.mxu0 0.0
    %529 = vmatprep.subr.mxu0 0.0
    %530 = vmatpush2.msra.mxu0 0.0
    %531 = vmatprep.subr.mxu0 0.0
    %532 = vmatpush2.msra.mxu0 0.0
    %533 = vmatprep.subr.mxu0 0.0
    %534 = vmatpush2.msra.mxu0 0.0
    %535 = vmatprep.subr.mxu0 0.0
    %536 = vmatpush2.msra.mxu0 0.0
    %537 = vmatprep.subr.mxu0 0.0
    %538 = vmatpush2.msra.mxu0 0.0
    %539 = vmatprep.subr.mxu0 0.0
    %540 = vmatpush2.msra.mxu0 0.0
    %541 = vmatprep.subr.mxu0 0.0
    %542 = vmatpush2.msra.mxu0 0.0
    %543 = vmatprep.subr.mxu0 0.0
    %544 = vmatpush2.msra.mxu0 0.0
    %545 = vmatprep.subr.mxu0 0.0
    %546 = vmatpush2.msra.mxu0 0.0
    %547 = vmatprep.mubr.f32.mxu0 0.0
    %548 = vmatmul.mubr.f32.gmra.mxu0 %v481
    %v549 = vpop.f32.mrf.mxu0
    %v550 = vadd.f32 0.0, %v549
    %v551 = vpop.f32.mrf.mxu0
    %552 = vdwg.mxu0
    %vm553 = vcmp.gt.f32.partialorder %v477, 0.0
    %vm554 = vcmp.gt.f32.partialorder %v550, 0.0
    %v555 = vmul.f32 %v477, 0.01
    %v556 = vmul.f32 %v550, 0.01
    %v557 = vsel %vm553, %v477, %v555
    %v558 = vsel %vm554, %v550, %v556
    %v559 = vmul.f32 %v557, %v215
    %v560 = vmul.f32 %v558, %v216
    %v561 = vadd.f32 %v559, 0.0
    %v562 = vadd.f32 %v560, 0.0
    %563 = vrot.lane.b32.xlu0 %v213, 120
    %v564 = vpop.permute.xlu0 %563
    %565 = vrot.lane.b32.xlu0 %v122, 120
    %v566 = vpop.permute.xlu0 %565
    %v567 = vsel %vm48, %v564, 0
    %v569 = vsel %vm48, %v566, 0
    %571 = vmatprep.subr.mxu0 0.0
    %572 = vmatpush1.xpose.msra.mxu0 0.0
    %573 = vmatprep.subr.mxu0 0.0
    %574 = vmatpush1.xpose.msra.mxu0 0.0
    %575 = vmatprep.subr.mxu0 0.0
    %576 = vmatpush1.xpose.msra.mxu0 0.0
    %577 = vmatprep.subr.mxu0 0.0
    %578 = vmatpush1.xpose.msra.mxu0 0.0
    %579 = vmatprep.subr.mxu0 0.0
    %580 = vmatpush1.xpose.msra.mxu0 0.0
    %581 = vmatprep.subr.mxu0 0.0
    %582 = vmatpush1.xpose.msra.mxu0 0.0
    %583 = vmatprep.subr.mxu0 0.0
    %584 = vmatpush1.xpose.msra.mxu0 0.0
    %585 = vmatprep.subr.mxu0 0.0
    %586 = vmatpush1.xpose.msra.mxu0 0.0
    %587 = vmatprep.subr.mxu0 0.0
    %588 = vmatpush1.xpose.msra.mxu0 0.0
    %589 = vmatprep.subr.mxu0 0.0
    %590 = vmatpush1.xpose.msra.mxu0 0.0
    %591 = vmatprep.subr.mxu0 0.0
    %592 = vmatpush1.xpose.msra.mxu0 0.0
    %593 = vmatprep.subr.mxu0 0.0
    %594 = vmatpush1.xpose.msra.mxu0 0.0
    %595 = vmatprep.subr.mxu0 0.0
    %596 = vmatpush1.xpose.msra.mxu0 0.0
    %597 = vmatprep.subr.mxu0 0.0
    %598 = vmatpush1.xpose.msra.mxu0 0.0
    %599 = vmatprep.subr.mxu0 0.0
    %600 = vmatpush1.xpose.msra.mxu0 0.0
    %601 = vmatprep.subr.mxu0 0.0
    %602 = vmatpush1.xpose.msra.mxu0 %v569
    %603 = vmatprep.subr.mxu0 0.0
    %604 = vmatpush2.xpose.msra.mxu0 0.0
    %605 = vmatprep.subr.mxu0 0.0
    %606 = vmatpush2.xpose.msra.mxu0 0.0
    %607 = vmatprep.subr.mxu0 0.0
    %608 = vmatpush2.xpose.msra.mxu0 0.0
    %609 = vmatprep.subr.mxu0 0.0
    %610 = vmatpush2.xpose.msra.mxu0 0.0
    %611 = vmatprep.subr.mxu0 0.0
    %612 = vmatpush2.xpose.msra.mxu0 0.0
    %613 = vmatprep.subr.mxu0 0.0
    %614 = vmatpush2.xpose.msra.mxu0 0.0
    %615 = vmatprep.subr.mxu0 0.0
    %616 = vmatpush2.xpose.msra.mxu0 0.0
    %617 = vmatprep.subr.mxu0 0.0
    %618 = vmatpush2.xpose.msra.mxu0 0.0
    %619 = vmatprep.subr.mxu0 0.0
    %620 = vmatpush2.xpose.msra.mxu0 0.0
    %621 = vmatprep.subr.mxu0 0.0
    %622 = vmatpush2.xpose.msra.mxu0 0.0
    %623 = vmatprep.subr.mxu0 0.0
    %624 = vmatpush2.xpose.msra.mxu0 0.0
    %625 = vmatprep.subr.mxu0 0.0
    %626 = vmatpush2.xpose.msra.mxu0 0.0
    %627 = vmatprep.subr.mxu0 0.0
    %628 = vmatpush2.xpose.msra.mxu0 0.0
    %629 = vmatprep.subr.mxu0 0.0
    %630 = vmatpush2.xpose.msra.mxu0 0.0
    %631 = vmatprep.subr.mxu0 0.0
    %632 = vmatpush2.xpose.msra.mxu0 0.0
    %633 = vmatprep.subr.mxu0 0.0
    %634 = vmatpush2.xpose.msra.mxu0 0.0
    %635 = vmatprep.mubr.f32.mxu0 0.0
    %636 = vmatmul.mubr.f32.gmra.mxu0 %v567
    %v637 = vpop.f32.mrf.mxu0
    %v638 = vadd.f32 0.0, %v637
    %v639 = vpop.f32.mrf.mxu0
    %640 = vdwg.mxu0
    %641 = vrot.lane.b32.xlu0 %v214, 120
    %v642 = vpop.permute.xlu0 %641
    %643 = vrot.lane.b32.xlu0 %v127, 120
    %v644 = vpop.permute.xlu0 %643
    %v645 = vsel %vm48, %v642, 0
    %v647 = vsel %vm48, %v644, 0
    %649 = vmatprep.subr.mxu0 0.0
    %650 = vmatpush1.xpose.msra.mxu0 0.0
    %651 = vmatprep.subr.mxu0 0.0
    %652 = vmatpush1.xpose.msra.mxu0 0.0
    %653 = vmatprep.subr.mxu0 0.0
    %654 = vmatpush1.xpose.msra.mxu0 0.0
    %655 = vmatprep.subr.mxu0 0.0
    %656 = vmatpush1.xpose.msra.mxu0 0.0
    %657 = vmatprep.subr.mxu0 0.0
    %658 = vmatpush1.xpose.msra.mxu0 0.0
    %659 = vmatprep.subr.mxu0 0.0
    %660 = vmatpush1.xpose.msra.mxu0 0.0
    %661 = vmatprep.subr.mxu0 0.0
    %662 = vmatpush1.xpose.msra.mxu0 0.0
    %663 = vmatprep.subr.mxu0 0.0
    %664 = vmatpush1.xpose.msra.mxu0 0.0
    %665 = vmatprep.subr.mxu0 0.0
    %666 = vmatpush1.xpose.msra.mxu0 0.0
    %667 = vmatprep.subr.mxu0 0.0
    %668 = vmatpush1.xpose.msra.mxu0 0.0
    %669 = vmatprep.subr.mxu0 0.0
    %670 = vmatpush1.xpose.msra.mxu0 0.0
    %671 = vmatprep.subr.mxu0 0.0
    %672 = vmatpush1.xpose.msra.mxu0 0.0
    %673 = vmatprep.subr.mxu0 0.0
    %674 = vmatpush1.xpose.msra.mxu0 0.0
    %675 = vmatprep.subr.mxu0 0.0
    %676 = vmatpush1.xpose.msra.mxu0 0.0
    %677 = vmatprep.subr.mxu0 0.0
    %678 = vmatpush1.xpose.msra.mxu0 0.0
    %679 = vmatprep.subr.mxu0 0.0
    %680 = vmatpush1.xpose.msra.mxu0 %v647
    %681 = vmatprep.subr.mxu0 0.0
    %682 = vmatpush2.xpose.msra.mxu0 0.0
    %683 = vmatprep.subr.mxu0 0.0
    %684 = vmatpush2.xpose.msra.mxu0 0.0
    %685 = vmatprep.subr.mxu0 0.0
    %686 = vmatpush2.xpose.msra.mxu0 0.0
    %687 = vmatprep.subr.mxu0 0.0
    %688 = vmatpush2.xpose.msra.mxu0 0.0
    %689 = vmatprep.subr.mxu0 0.0
    %690 = vmatpush2.xpose.msra.mxu0 0.0
    %691 = vmatprep.subr.mxu0 0.0
    %692 = vmatpush2.xpose.msra.mxu0 0.0
    %693 = vmatprep.subr.mxu0 0.0
    %694 = vmatpush2.xpose.msra.mxu0 0.0
    %695 = vmatprep.subr.mxu0 0.0
    %696 = vmatpush2.xpose.msra.mxu0 0.0
    %697 = vmatprep.subr.mxu0 0.0
    %698 = vmatpush2.xpose.msra.mxu0 0.0
    %699 = vmatprep.subr.mxu0 0.0
    %700 = vmatpush2.xpose.msra.mxu0 0.0
    %701 = vmatprep.subr.mxu0 0.0
    %702 = vmatpush2.xpose.msra.mxu0 0.0
    %703 = vmatprep.subr.mxu0 0.0
    %704 = vmatpush2.xpose.msra.mxu0 0.0
    %705 = vmatprep.subr.mxu0 0.0
    %706 = vmatpush2.xpose.msra.mxu0 0.0
    %707 = vmatprep.subr.mxu0 0.0
    %708 = vmatpush2.xpose.msra.mxu0 0.0
    %709 = vmatprep.subr.mxu0 0.0
    %710 = vmatpush2.xpose.msra.mxu0 0.0
    %711 = vmatprep.subr.mxu0 0.0
    %712 = vmatpush2.xpose.msra.mxu0 0.0
    %713 = vmatprep.mubr.f32.mxu0 0.0
    %714 = vmatmul.mubr.f32.gmra.mxu0 %v645
    %v715 = vpop.f32.mrf.mxu0
    %v716 = vadd.f32 0.0, %v715
    %v717 = vpop.f32.mrf.mxu0
    %718 = vdwg.mxu0
    %v719 = vmul.f32 %v638, 0.35355338
    %v720 = vmul.f32 %v716, 0.35355338
    %v721 = vsel %vm48, %v719, -inf
    %722 = vmax.xlane.f32.xlu0 %v721
    %v723 = vpop.xlane.xlu0 %722
    %v724 = vsel %vm48, %v720, -inf
    %725 = vmax.xlane.f32.xlu0 %v724
    %v726 = vpop.xlane.xlu0 %725
    %v727 = vsub.f32 %v719, %v723
    %v728 = vsub.f32 %v720, %v726
    %v729 = vmul.f32 %v727, 1.442695
    %v730 = vpow.pop %v729
    %v731 = vmul.f32 %v728, 1.442695
    %v732 = vpow.pop %v731
    %v733 = vsel %vm48, %v730, 0.0
    %734 = vadd.xlane.f32.xlu0 %v733
    %v735 = vpop.xlane.xlu0 %734
    %v736 = vsel %vm48, %v732, 0.0
    %737 = vadd.xlane.f32.xlu0 %v736
    %v738 = vpop.xlane.xlu0 %737
    %v739 = vrcp.pop %v735
    %v740 = vrcp.pop %v738
    %v741 = vmul.f32 %v730, %v739
    %v742 = vmul.f32 %v732, %v740
    %v743 = vsel %vm48, %v741, 0.0
    %v744 = vrot.slane %v743, 4
    %v745 = vadd.f32 %v743, %v744
    %v746 = vrot.slane %v745, 2
    %v747 = vadd.f32 %v745, %v746
    %v748 = vrot.slane %v747, 1
    %v749 = vadd.f32 %v747, %v748
    %v750 = vsel %vm48, %v742, 0.0
    %v751 = vrot.slane %v750, 4
    %v752 = vadd.f32 %v750, %v751
    %v753 = vrot.slane %v752, 2
    %v754 = vadd.f32 %v752, %v753
    %v755 = vrot.slane %v754, 1
    %v756 = vadd.f32 %v754, %v755
    %758 = vrot.lane.b32.xlu0 %v205, 120
    %v759 = vpop.permute.xlu0 %758
    %v762 = vsel %vm48, %v749, 0
    %764 = vmatprep.subr.mxu0 0.0
    %765 = vmatpush1.msra.mxu0 0.0
    %766 = vmatprep.subr.mxu0 0.0
    %767 = vmatpush1.msra.mxu0 0.0
    %768 = vmatprep.subr.mxu0 0.0
    %769 = vmatpush1.msra.mxu0 0.0
    %770 = vmatprep.subr.mxu0 0.0
    %771 = vmatpush1.msra.mxu0 0.0
    %772 = vmatprep.subr.mxu0 0.0
    %773 = vmatpush1.msra.mxu0 0.0
    %774 = vmatprep.subr.mxu0 0.0
    %775 = vmatpush1.msra.mxu0 0.0
    %776 = vmatprep.subr.mxu0 0.0
    %777 = vmatpush1.msra.mxu0 0.0
    %778 = vmatprep.subr.mxu0 0.0
    %779 = vmatpush1.msra.mxu0 0.0
    %780 = vmatprep.subr.mxu0 0.0
    %781 = vmatpush1.msra.mxu0 0.0
    %782 = vmatprep.subr.mxu0 0.0
    %783 = vmatpush1.msra.mxu0 0.0
    %784 = vmatprep.subr.mxu0 0.0
    %785 = vmatpush1.msra.mxu0 0.0
    %786 = vmatprep.subr.mxu0 0.0
    %787 = vmatpush1.msra.mxu0 0.0
    %788 = vmatprep.subr.mxu0 0.0
    %789 = vmatpush1.msra.mxu0 0.0
    %790 = vmatprep.subr.mxu0 0.0
    %791 = vmatpush1.msra.mxu0 0.0
    %792 = vmatprep.subr.mxu0 0.0
    %793 = vmatpush1.msra.mxu0 0.0
    %794 = vmatprep.subr.mxu0 0.0
    %795 = vmatpush1.msra.mxu0 %v759
    %796 = vmatprep.subr.mxu0 0.0
    %797 = vmatpush2.msra.mxu0 0.0
    %798 = vmatprep.subr.mxu0 0.0
    %799 = vmatpush2.msra.mxu0 0.0
    %800 = vmatprep.subr.mxu0 0.0
    %801 = vmatpush2.msra.mxu0 0.0
    %802 = vmatprep.subr.mxu0 0.0
    %803 = vmatpush2.msra.mxu0 0.0
    %804 = vmatprep.subr.mxu0 0.0
    %805 = vmatpush2.msra.mxu0 0.0
    %806 = vmatprep.subr.mxu0 0.0
    %807 = vmatpush2.msra.mxu0 0.0
    %808 = vmatprep.subr.mxu0 0.0
    %809 = vmatpush2.msra.mxu0 0.0
    %810 = vmatprep.subr.mxu0 0.0
    %811 = vmatpush2.msra.mxu0 0.0
    %812 = vmatprep.subr.mxu0 0.0
    %813 = vmatpush2.msra.mxu0 0.0
    %814 = vmatprep.subr.mxu0 0.0
    %815 = vmatpush2.msra.mxu0 0.0
    %816 = vmatprep.subr.mxu0 0.0
    %817 = vmatpush2.msra.mxu0 0.0
    %818 = vmatprep.subr.mxu0 0.0
    %819 = vmatpush2.msra.mxu0 0.0
    %820 = vmatprep.subr.mxu0 0.0
    %821 = vmatpush2.msra.mxu0 0.0
    %822 = vmatprep.subr.mxu0 0.0
    %823 = vmatpush2.msra.mxu0 0.0
    %824 = vmatprep.subr.mxu0 0.0
    %825 = vmatpush2.msra.mxu0 0.0
    %826 = vmatprep.subr.mxu0 0.0
    %827 = vmatpush2.msra.mxu0 0.0
    %828 = vmatprep.mubr.f32.mxu0 0.0
    %829 = vmatmul.mubr.f32.gmra.mxu0 %v762
    %v830 = vpop.f32.mrf.mxu0
    %v831 = vadd.f32 0.0, %v830
    %v832 = vpop.f32.mrf.mxu0
    %833 = vdwg.mxu0
    %835 = vrot.lane.b32.xlu0 %v210, 120
    %v836 = vpop.permute.xlu0 %835
    %v839 = vsel %vm48, %v756, 0
    %841 = vmatprep.subr.mxu0 0.0
    %842 = vmatpush1.msra.mxu0 0.0
    %843 = vmatprep.subr.mxu0 0.0
    %844 = vmatpush1.msra.mxu0 0.0
    %845 = vmatprep.subr.mxu0 0.0
    %846 = vmatpush1.msra.mxu0 0.0
    %847 = vmatprep.subr.mxu0 0.0
    %848 = vmatpush1.msra.mxu0 0.0
    %849 = vmatprep.subr.mxu0 0.0
    %850 = vmatpush1.msra.mxu0 0.0
    %851 = vmatprep.subr.mxu0 0.0
    %852 = vmatpush1.msra.mxu0 0.0
    %853 = vmatprep.subr.mxu0 0.0
    %854 = vmatpush1.msra.mxu0 0.0
    %855 = vmatprep.subr.mxu0 0.0
    %856 = vmatpush1.msra.mxu0 0.0
    %857 = vmatprep.subr.mxu0 0.0
    %858 = vmatpush1.msra.mxu0 0.0
    %859 = vmatprep.subr.mxu0 0.0
    %860 = vmatpush1.msra.mxu0 0.0
    %861 = vmatprep.subr.mxu0 0.0
    %862 = vmatpush1.msra.mxu0 0.0
    %863 = vmatprep.subr.mxu0 0.0
    %864 = vmatpush1.msra.mxu0 0.0
    %865 = vmatprep.subr.mxu0 0.0
    %866 = vmatpush1.msra.mxu0 0.0
    %867 = vmatprep.subr.mxu0 0.0
    %868 = vmatpush1.msra.mxu0 0.0
    %869 = vmatprep.subr.mxu0 0.0
    %870 = vmatpush1.msra.mxu0 0.0
    %871 = vmatprep.subr.mxu0 0.0
    %872 = vmatpush1.msra.mxu0 %v836
    %873 = vmatprep.subr.mxu0 0.0
    %874 = vmatpush2.msra.mxu0 0.0
    %875 = vmatprep.subr.mxu0 0.0
    %876 = vmatpush2.msra.mxu0 0.0
    %877 = vmatprep.subr.mxu0 0.0
    %878 = vmatpush2.msra.mxu0 0.0
    %879 = vmatprep.subr.mxu0 0.0
    %880 = vmatpush2.msra.mxu0 0.0
    %881 = vmatprep.subr.mxu0 0.0
    %882 = vmatpush2.msra.mxu0 0.0
    %883 = vmatprep.subr.mxu0 0.0
    %884 = vmatpush2.msra.mxu0 0.0
    %885 = vmatprep.subr.mxu0 0.0
    %886 = vmatpush2.msra.mxu0 0.0
    %887 = vmatprep.subr.mxu0 0.0
    %888 = vmatpush2.msra.mxu0 0.0
    %889 = vmatprep.subr.mxu0 0.0
    %890 = vmatpush2.msra.mxu0 0.0
    %891 = vmatprep.subr.mxu0 0.0
    %892 = vmatpush2.msra.mxu0 0.0
    %893 = vmatprep.subr.mxu0 0.0
    %894 = vmatpush2.msra.mxu0 0.0
    %895 = vmatprep.subr.mxu0 0.0
    %896 = vmatpush2.msra.mxu0 0.0
    %897 = vmatprep.subr.mxu0 0.0
    %898 = vmatpush2.msra.mxu0 0.0
    %899 = vmatprep.subr.mxu0 0.0
    %900 = vmatpush2.msra.mxu0 0.0
    %901 = vmatprep.subr.mxu0 0.0
    %902 = vmatpush2.msra.mxu0 0.0
    %903 = vmatprep.subr.mxu0 0.0
    %904 = vmatpush2.msra.mxu0 0.0
    %905 = vmatprep.mubr.f32.mxu0 0.0
    %906 = vmatmul.mubr.f32.gmra.mxu0 %v839
    %v907 = vpop.f32.mrf.mxu0
    %v908 = vadd.f32 0.0, %v907
    %v909 = vpop.f32.mrf.mxu0
    %910 = vdwg.mxu0
    %vm911 = vcmp.gt.f32.partialorder %v831, 0.0
    %vm912 = vcmp.gt.f32.partialorder %v908, 0.0
    %v913 = vmul.f32 %v831, 0.01
    %v914 = vmul.f32 %v908, 0.01
    %v915 = vsel %vm911, %v831, %v913
    %v916 = vsel %vm912, %v908, %v914
    %v919 = vlaneseq
    %v920 = vshrl.u32 %v919, 7
    %v921 = vsub.s32 0, %v920
    %v922 = vrot.slane %v215, %v921
    %v923 = vlaneseq
    %v924 = vshrl.u32 %v923, 7
    %v925 = vsub.s32 0, %v924
    %v926 = vrot.slane %v216, %v925
    %927 = vrot.lane.b32.xlu0 %v922, 120
    %v928 = vpop.permute.xlu0 %927
    %929 = vrot.lane.b32.xlu0 %v926, 120
    %v930 = vpop.permute.xlu0 %929
    %v933 = vmul.f32 %v915, %v928
    %v934 = vmul.f32 %v916, %v930
    %v935 = vadd.f32 %v561, %v933
    %v936 = vadd.f32 %v562, %v934
    %937 = vrot.lane.b32.xlu0 %v213, 112
    %v938 = vpop.permute.xlu0 %937
    %939 = vrot.lane.b32.xlu0 %v122, 112
    %v940 = vpop.permute.xlu0 %939
    %v941 = vsel %vm48, %v938, 0
    %v943 = vsel %vm48, %v940, 0
    %945 = vmatprep.subr.mxu0 0.0
    %946 = vmatpush1.xpose.msra.mxu0 0.0
    %947 = vmatprep.subr.mxu0 0.0
    %948 = vmatpush1.xpose.msra.mxu0 0.0
    %949 = vmatprep.subr.mxu0 0.0
    %950 = vmatpush1.xpose.msra.mxu0 0.0
    %951 = vmatprep.subr.mxu0 0.0
    %952 = vmatpush1.xpose.msra.mxu0 0.0
    %953 = vmatprep.subr.mxu0 0.0
    %954 = vmatpush1.xpose.msra.mxu0 0.0
    %955 = vmatprep.subr.mxu0 0.0
    %956 = vmatpush1.xpose.msra.mxu0 0.0
    %957 = vmatprep.subr.mxu0 0.0
    %958 = vmatpush1.xpose.msra.mxu0 0.0
    %959 = vmatprep.subr.mxu0 0.0
    %960 = vmatpush1.xpose.msra.mxu0 0.0
    %961 = vmatprep.subr.mxu0 0.0
    %962 = vmatpush1.xpose.msra.mxu0 0.0
    %963 = vmatprep.subr.mxu0 0.0
    %964 = vmatpush1.xpose.msra.mxu0 0.0
    %965 = vmatprep.subr.mxu0 0.0
    %966 = vmatpush1.xpose.msra.mxu0 0.0
    %967 = vmatprep.subr.mxu0 0.0
    %968 = vmatpush1.xpose.msra.mxu0 0.0
    %969 = vmatprep.subr.mxu0 0.0
    %970 = vmatpush1.xpose.msra.mxu0 0.0
    %971 = vmatprep.subr.mxu0 0.0
    %972 = vmatpush1.xpose.msra.mxu0 0.0
    %973 = vmatprep.subr.mxu0 0.0
    %974 = vmatpush1.xpose.msra.mxu0 0.0
    %975 = vmatprep.subr.mxu0 0.0
    %976 = vmatpush1.xpose.msra.mxu0 %v943
    %977 = vmatprep.subr.mxu0 0.0
    %978 = vmatpush2.xpose.msra.mxu0 0.0
    %979 = vmatprep.subr.mxu0 0.0
    %980 = vmatpush2.xpose.msra.mxu0 0.0
    %981 = vmatprep.subr.mxu0 0.0
    %982 = vmatpush2.xpose.msra.mxu0 0.0
    %983 = vmatprep.subr.mxu0 0.0
    %984 = vmatpush2.xpose.msra.mxu0 0.0
    %985 = vmatprep.subr.mxu0 0.0
    %986 = vmatpush2.xpose.msra.mxu0 0.0
    %987 = vmatprep.subr.mxu0 0.0
    %988 = vmatpush2.xpose.msra.mxu0 0.0
    %989 = vmatprep.subr.mxu0 0.0
    %990 = vmatpush2.xpose.msra.mxu0 0.0
    %991 = vmatprep.subr.mxu0 0.0
    %992 = vmatpush2.xpose.msra.mxu0 0.0
    %993 = vmatprep.subr.mxu0 0.0
    %994 = vmatpush2.xpose.msra.mxu0 0.0
    %995 = vmatprep.subr.mxu0 0.0
    %996 = vmatpush2.xpose.msra.mxu0 0.0
    %997 = vmatprep.subr.mxu0 0.0
    %998 = vmatpush2.xpose.msra.mxu0 0.0
    %999 = vmatprep.subr.mxu0 0.0
    %1000 = vmatpush2.xpose.msra.mxu0 0.0
    %1001 = vmatprep.subr.mxu0 0.0
    %1002 = vmatpush2.xpose.msra.mxu0 0.0
    %1003 = vmatprep.subr.mxu0 0.0
    %1004 = vmatpush2.xpose.msra.mxu0 0.0
    %1005 = vmatprep.subr.mxu0 0.0
    %1006 = vmatpush2.xpose.msra.mxu0 0.0
    %1007 = vmatprep.subr.mxu0 0.0
    %1008 = vmatpush2.xpose.msra.mxu0 0.0
    %1009 = vmatprep.mubr.f32.mxu0 0.0
    %1010 = vmatmul.mubr.f32.gmra.mxu0 %v941
    %v1011 = vpop.f32.mrf.mxu0
    %v1012 = vadd.f32 0.0, %v1011
    %v1013 = vpop.f32.mrf.mxu0
    %1014 = vdwg.mxu0
    %1015 = vrot.lane.b32.xlu0 %v214, 112
    %v1016 = vpop.permute.xlu0 %1015
    %1017 = vrot.lane.b32.xlu0 %v127, 112
    %v1018 = vpop.permute.xlu0 %1017
    %v1019 = vsel %vm48, %v1016, 0
    %v1021 = vsel %vm48, %v1018, 0
    %1023 = vmatprep.subr.mxu0 0.0
    %1024 = vmatpush1.xpose.msra.mxu0 0.0
    %1025 = vmatprep.subr.mxu0 0.0
    %1026 = vmatpush1.xpose.msra.mxu0 0.0
    %1027 = vmatprep.subr.mxu0 0.0
    %1028 = vmatpush1.xpose.msra.mxu0 0.0
    %1029 = vmatprep.subr.mxu0 0.0
    %1030 = vmatpush1.xpose.msra.mxu0 0.0
    %1031 = vmatprep.subr.mxu0 0.0
    %1032 = vmatpush1.xpose.msra.mxu0 0.0
    %1033 = vmatprep.subr.mxu0 0.0
    %1034 = vmatpush1.xpose.msra.mxu0 0.0
    %1035 = vmatprep.subr.mxu0 0.0
    %1036 = vmatpush1.xpose.msra.mxu0 0.0
    %1037 = vmatprep.subr.mxu0 0.0
    %1038 = vmatpush1.xpose.msra.mxu0 0.0
    %1039 = vmatprep.subr.mxu0 0.0
    %1040 = vmatpush1.xpose.msra.mxu0 0.0
    %1041 = vmatprep.subr.mxu0 0.0
    %1042 = vmatpush1.xpose.msra.mxu0 0.0
    %1043 = vmatprep.subr.mxu0 0.0
    %1044 = vmatpush1.xpose.msra.mxu0 0.0
    %1045 = vmatprep.subr.mxu0 0.0
    %1046 = vmatpush1.xpose.msra.mxu0 0.0
    %1047 = vmatprep.subr.mxu0 0.0
    %1048 = vmatpush1.xpose.msra.mxu0 0.0
    %1049 = vmatprep.subr.mxu0 0.0
    %1050 = vmatpush1.xpose.msra.mxu0 0.0
    %1051 = vmatprep.subr.mxu0 0.0
    %1052 = vmatpush1.xpose.msra.mxu0 0.0
    %1053 = vmatprep.subr.mxu0 0.0
    %1054 = vmatpush1.xpose.msra.mxu0 %v1021
    %1055 = vmatprep.subr.mxu0 0.0
    %1056 = vmatpush2.xpose.msra.mxu0 0.0
    %1057 = vmatprep.subr.mxu0 0.0
    %1058 = vmatpush2.xpose.msra.mxu0 0.0
    %1059 = vmatprep.subr.mxu0 0.0
    %1060 = vmatpush2.xpose.msra.mxu0 0.0
    %1061 = vmatprep.subr.mxu0 0.0
    %1062 = vmatpush2.xpose.msra.mxu0 0.0
    %1063 = vmatprep.subr.mxu0 0.0
    %1064 = vmatpush2.xpose.msra.mxu0 0.0
    %1065 = vmatprep.subr.mxu0 0.0
    %1066 = vmatpush2.xpose.msra.mxu0 0.0
    %1067 = vmatprep.subr.mxu0 0.0
    %1068 = vmatpush2.xpose.msra.mxu0 0.0
    %1069 = vmatprep.subr.mxu0 0.0
    %1070 = vmatpush2.xpose.msra.mxu0 0.0
    %1071 = vmatprep.subr.mxu0 0.0
    %1072 = vmatpush2.xpose.msra.mxu0 0.0
    %1073 = vmatprep.subr.mxu0 0.0
    %1074 = vmatpush2.xpose.msra.mxu0 0.0
    %1075 = vmatprep.subr.mxu0 0.0
    %1076 = vmatpush2.xpose.msra.mxu0 0.0
    %1077 = vmatprep.subr.mxu0 0.0
    %1078 = vmatpush2.xpose.msra.mxu0 0.0
    %1079 = vmatprep.subr.mxu0 0.0
    %1080 = vmatpush2.xpose.msra.mxu0 0.0
    %1081 = vmatprep.subr.mxu0 0.0
    %1082 = vmatpush2.xpose.msra.mxu0 0.0
    %1083 = vmatprep.subr.mxu0 0.0
    %1084 = vmatpush2.xpose.msra.mxu0 0.0
    %1085 = vmatprep.subr.mxu0 0.0
    %1086 = vmatpush2.xpose.msra.mxu0 0.0
    %1087 = vmatprep.mubr.f32.mxu0 0.0
    %1088 = vmatmul.mubr.f32.gmra.mxu0 %v1019
    %v1089 = vpop.f32.mrf.mxu0
    %v1090 = vadd.f32 0.0, %v1089
    %v1091 = vpop.f32.mrf.mxu0
    %1092 = vdwg.mxu0
    %v1093 = vmul.f32 %v1012, 0.35355338
    %v1094 = vmul.f32 %v1090, 0.35355338
    %v1095 = vsel %vm48, %v1093, -inf
    %1096 = vmax.xlane.f32.xlu0 %v1095
    %v1097 = vpop.xlane.xlu0 %1096
    %v1098 = vsel %vm48, %v1094, -inf
    %1099 = vmax.xlane.f32.xlu0 %v1098
    %v1100 = vpop.xlane.xlu0 %1099
    %v1101 = vsub.f32 %v1093, %v1097
    %v1102 = vsub.f32 %v1094, %v1100
    %v1103 = vmul.f32 %v1101, 1.442695
    %v1104 = vpow.pop %v1103
    %v1105 = vmul.f32 %v1102, 1.442695
    %v1106 = vpow.pop %v1105
    %v1107 = vsel %vm48, %v1104, 0.0
    %1108 = vadd.xlane.f32.xlu0 %v1107
    %v1109 = vpop.xlane.xlu0 %1108
    %v1110 = vsel %vm48, %v1106, 0.0
    %1111 = vadd.xlane.f32.xlu0 %v1110
    %v1112 = vpop.xlane.xlu0 %1111
    %v1113 = vrcp.pop %v1109
    %v1114 = vrcp.pop %v1112
    %v1115 = vmul.f32 %v1104, %v1113
    %v1116 = vmul.f32 %v1106, %v1114
    %v1117 = vsel %vm48, %v1115, 0.0
    %v1118 = vrot.slane %v1117, 4
    %v1119 = vadd.f32 %v1117, %v1118
    %v1120 = vrot.slane %v1119, 2
    %v1121 = vadd.f32 %v1119, %v1120
    %v1122 = vrot.slane %v1121, 1
    %v1123 = vadd.f32 %v1121, %v1122
    %v1124 = vsel %vm48, %v1116, 0.0
    %v1125 = vrot.slane %v1124, 4
    %v1126 = vadd.f32 %v1124, %v1125
    %v1127 = vrot.slane %v1126, 2
    %v1128 = vadd.f32 %v1126, %v1127
    %v1129 = vrot.slane %v1128, 1
    %v1130 = vadd.f32 %v1128, %v1129
    %1131 = vrot.lane.b32.xlu0 %v205, 112
    %v1132 = vpop.permute.xlu0 %1131
    %v1135 = vsel %vm48, %v1123, 0
    %1137 = vmatprep.subr.mxu0 0.0
    %1138 = vmatpush1.msra.mxu0 0.0
    %1139 = vmatprep.subr.mxu0 0.0
    %1140 = vmatpush1.msra.mxu0 0.0
    %1141 = vmatprep.subr.mxu0 0.0
    %1142 = vmatpush1.msra.mxu0 0.0
    %1143 = vmatprep.subr.mxu0 0.0
    %1144 = vmatpush1.msra.mxu0 0.0
    %1145 = vmatprep.subr.mxu0 0.0
    %1146 = vmatpush1.msra.mxu0 0.0
    %1147 = vmatprep.subr.mxu0 0.0
    %1148 = vmatpush1.msra.mxu0 0.0
    %1149 = vmatprep.subr.mxu0 0.0
    %1150 = vmatpush1.msra.mxu0 0.0
    %1151 = vmatprep.subr.mxu0 0.0
    %1152 = vmatpush1.msra.mxu0 0.0
    %1153 = vmatprep.subr.mxu0 0.0
    %1154 = vmatpush1.msra.mxu0 0.0
    %1155 = vmatprep.subr.mxu0 0.0
    %1156 = vmatpush1.msra.mxu0 0.0
    %1157 = vmatprep.subr.mxu0 0.0
    %1158 = vmatpush1.msra.mxu0 0.0
    %1159 = vmatprep.subr.mxu0 0.0
    %1160 = vmatpush1.msra.mxu0 0.0
    %1161 = vmatprep.subr.mxu0 0.0
    %1162 = vmatpush1.msra.mxu0 0.0
    %1163 = vmatprep.subr.mxu0 0.0
    %1164 = vmatpush1.msra.mxu0 0.0
    %1165 = vmatprep.subr.mxu0 0.0
    %1166 = vmatpush1.msra.mxu0 0.0
    %1167 = vmatprep.subr.mxu0 0.0
    %1168 = vmatpush1.msra.mxu0 %v1132
    %1169 = vmatprep.subr.mxu0 0.0
    %1170 = vmatpush2.msra.mxu0 0.0
    %1171 = vmatprep.subr.mxu0 0.0
    %1172 = vmatpush2.msra.mxu0 0.0
    %1173 = vmatprep.subr.mxu0 0.0
    %1174 = vmatpush2.msra.mxu0 0.0
    %1175 = vmatprep.subr.mxu0 0.0
    %1176 = vmatpush2.msra.mxu0 0.0
    %1177 = vmatprep.subr.mxu0 0.0
    %1178 = vmatpush2.msra.mxu0 0.0
    %1179 = vmatprep.subr.mxu0 0.0
    %1180 = vmatpush2.msra.mxu0 0.0
    %1181 = vmatprep.subr.mxu0 0.0
    %1182 = vmatpush2.msra.mxu0 0.0
    %1183 = vmatprep.subr.mxu0 0.0
    %1184 = vmatpush2.msra.mxu0 0.0
    %1185 = vmatprep.subr.mxu0 0.0
    %1186 = vmatpush2.msra.mxu0 0.0
    %1187 = vmatprep.subr.mxu0 0.0
    %1188 = vmatpush2.msra.mxu0 0.0
    %1189 = vmatprep.subr.mxu0 0.0
    %1190 = vmatpush2.msra.mxu0 0.0
    %1191 = vmatprep.subr.mxu0 0.0
    %1192 = vmatpush2.msra.mxu0 0.0
    %1193 = vmatprep.subr.mxu0 0.0
    %1194 = vmatpush2.msra.mxu0 0.0
    %1195 = vmatprep.subr.mxu0 0.0
    %1196 = vmatpush2.msra.mxu0 0.0
    %1197 = vmatprep.subr.mxu0 0.0
    %1198 = vmatpush2.msra.mxu0 0.0
    %1199 = vmatprep.subr.mxu0 0.0
    %1200 = vmatpush2.msra.mxu0 0.0
    %1201 = vmatprep.mubr.f32.mxu0 0.0
    %1202 = vmatmul.mubr.f32.gmra.mxu0 %v1135
    %v1203 = vpop.f32.mrf.mxu0
    %v1204 = vadd.f32 0.0, %v1203
    %v1205 = vpop.f32.mrf.mxu0
    %1206 = vdwg.mxu0
    %1207 = vrot.lane.b32.xlu0 %v210, 112
    %v1208 = vpop.permute.xlu0 %1207
    %v1211 = vsel %vm48, %v1130, 0
    %1213 = vmatprep.subr.mxu0 0.0
    %1214 = vmatpush1.msra.mxu0 0.0
    %1215 = vmatprep.subr.mxu0 0.0
    %1216 = vmatpush1.msra.mxu0 0.0
    %1217 = vmatprep.subr.mxu0 0.0
    %1218 = vmatpush1.msra.mxu0 0.0
    %1219 = vmatprep.subr.mxu0 0.0
    %1220 = vmatpush1.msra.mxu0 0.0
    %1221 = vmatprep.subr.mxu0 0.0
    %1222 = vmatpush1.msra.mxu0 0.0
    %1223 = vmatprep.subr.mxu0 0.0
    %1224 = vmatpush1.msra.mxu0 0.0
    %1225 = vmatprep.subr.mxu0 0.0
    %1226 = vmatpush1.msra.mxu0 0.0
    %1227 = vmatprep.subr.mxu0 0.0
    %1228 = vmatpush1.msra.mxu0 0.0
    %1229 = vmatprep.subr.mxu0 0.0
    %1230 = vmatpush1.msra.mxu0 0.0
    %1231 = vmatprep.subr.mxu0 0.0
    %1232 = vmatpush1.msra.mxu0 0.0
    %1233 = vmatprep.subr.mxu0 0.0
    %1234 = vmatpush1.msra.mxu0 0.0
    %1235 = vmatprep.subr.mxu0 0.0
    %1236 = vmatpush1.msra.mxu0 0.0
    %1237 = vmatprep.subr.mxu0 0.0
    %1238 = vmatpush1.msra.mxu0 0.0
    %1239 = vmatprep.subr.mxu0 0.0
    %1240 = vmatpush1.msra.mxu0 0.0
    %1241 = vmatprep.subr.mxu0 0.0
    %1242 = vmatpush1.msra.mxu0 0.0
    %1243 = vmatprep.subr.mxu0 0.0
    %1244 = vmatpush1.msra.mxu0 %v1208
    %1245 = vmatprep.subr.mxu0 0.0
    %1246 = vmatpush2.msra.mxu0 0.0
    %1247 = vmatprep.subr.mxu0 0.0
    %1248 = vmatpush2.msra.mxu0 0.0
    %1249 = vmatprep.subr.mxu0 0.0
    %1250 = vmatpush2.msra.mxu0 0.0
    %1251 = vmatprep.subr.mxu0 0.0
    %1252 = vmatpush2.msra.mxu0 0.0
    %1253 = vmatprep.subr.mxu0 0.0
    %1254 = vmatpush2.msra.mxu0 0.0
    %1255 = vmatprep.subr.mxu0 0.0
    %1256 = vmatpush2.msra.mxu0 0.0
    %1257 = vmatprep.subr.mxu0 0.0
    %1258 = vmatpush2.msra.mxu0 0.0
    %1259 = vmatprep.subr.mxu0 0.0
    %1260 = vmatpush2.msra.mxu0 0.0
    %1261 = vmatprep.subr.mxu0 0.0
    %1262 = vmatpush2.msra.mxu0 0.0
    %1263 = vmatprep.subr.mxu0 0.0
    %1264 = vmatpush2.msra.mxu0 0.0
    %1265 = vmatprep.subr.mxu0 0.0
    %1266 = vmatpush2.msra.mxu0 0.0
    %1267 = vmatprep.subr.mxu0 0.0
    %1268 = vmatpush2.msra.mxu0 0.0
    %1269 = vmatprep.subr.mxu0 0.0
    %1270 = vmatpush2.msra.mxu0 0.0
    %1271 = vmatprep.subr.mxu0 0.0
    %1272 = vmatpush2.msra.mxu0 0.0
    %1273 = vmatprep.subr.mxu0 0.0
    %1274 = vmatpush2.msra.mxu0 0.0
    %1275 = vmatprep.subr.mxu0 0.0
    %1276 = vmatpush2.msra.mxu0 0.0
    %1277 = vmatprep.mubr.f32.mxu0 0.0
    %1278 = vmatmul.mubr.f32.gmra.mxu0 %v1211
    %v1279 = vpop.f32.mrf.mxu0
    %v1280 = vadd.f32 0.0, %v1279
    %v1281 = vpop.f32.mrf.mxu0
    %1282 = vdwg.mxu0
    %vm1283 = vcmp.gt.f32.partialorder %v1204, 0.0
    %vm1284 = vcmp.gt.f32.partialorder %v1280, 0.0
    %v1285 = vmul.f32 %v1204, 0.01
    %v1286 = vmul.f32 %v1280, 0.01
    %v1287 = vsel %vm1283, %v1204, %v1285
    %v1288 = vsel %vm1284, %v1280, %v1286
    %1289 = vrot.lane.b32.xlu0 %v922, 112
    %v1290 = vpop.permute.xlu0 %1289
    %1291 = vrot.lane.b32.xlu0 %v926, 112
    %v1292 = vpop.permute.xlu0 %1291
    %v1295 = vmul.f32 %v1287, %v1290
    %v1296 = vmul.f32 %v1288, %v1292
    %v1297 = vadd.f32 %v935, %v1295
    %v1298 = vadd.f32 %v936, %v1296
    %1299 = vrot.lane.b32.xlu0 %v213, 104
    %v1300 = vpop.permute.xlu0 %1299
    %1301 = vrot.lane.b32.xlu0 %v122, 104
    %v1302 = vpop.permute.xlu0 %1301
    %v1303 = vsel %vm48, %v1300, 0
    %v1305 = vsel %vm48, %v1302, 0
    %1307 = vmatprep.subr.mxu0 0.0
    %1308 = vmatpush1.xpose.msra.mxu0 0.0
    %1309 = vmatprep.subr.mxu0 0.0
    %1310 = vmatpush1.xpose.msra.mxu0 0.0
    %1311 = vmatprep.subr.mxu0 0.0
    %1312 = vmatpush1.xpose.msra.mxu0 0.0
    %1313 = vmatprep.subr.mxu0 0.0
    %1314 = vmatpush1.xpose.msra.mxu0 0.0
    %1315 = vmatprep.subr.mxu0 0.0
    %1316 = vmatpush1.xpose.msra.mxu0 0.0
    %1317 = vmatprep.subr.mxu0 0.0
    %1318 = vmatpush1.xpose.msra.mxu0 0.0
    %1319 = vmatprep.subr.mxu0 0.0
    %1320 = vmatpush1.xpose.msra.mxu0 0.0
    %1321 = vmatprep.subr.mxu0 0.0
    %1322 = vmatpush1.xpose.msra.mxu0 0.0
    %1323 = vmatprep.subr.mxu0 0.0
    %1324 = vmatpush1.xpose.msra.mxu0 0.0
    %1325 = vmatprep.subr.mxu0 0.0
    %1326 = vmatpush1.xpose.msra.mxu0 0.0
    %1327 = vmatprep.subr.mxu0 0.0
    %1328 = vmatpush1.xpose.msra.mxu0 0.0
    %1329 = vmatprep.subr.mxu0 0.0
    %1330 = vmatpush1.xpose.msra.mxu0 0.0
    %1331 = vmatprep.subr.mxu0 0.0
    %1332 = vmatpush1.xpose.msra.mxu0 0.0
    %1333 = vmatprep.subr.mxu0 0.0
    %1334 = vmatpush1.xpose.msra.mxu0 0.0
    %1335 = vmatprep.subr.mxu0 0.0
    %1336 = vmatpush1.xpose.msra.mxu0 0.0
    %1337 = vmatprep.subr.mxu0 0.0
    %1338 = vmatpush1.xpose.msra.mxu0 %v1305
    %1339 = vmatprep.subr.mxu0 0.0
    %1340 = vmatpush2.xpose.msra.mxu0 0.0
    %1341 = vmatprep.subr.mxu0 0.0
    %1342 = vmatpush2.xpose.msra.mxu0 0.0
    %1343 = vmatprep.subr.mxu0 0.0
    %1344 = vmatpush2.xpose.msra.mxu0 0.0
    %1345 = vmatprep.subr.mxu0 0.0
    %1346 = vmatpush2.xpose.msra.mxu0 0.0
    %1347 = vmatprep.subr.mxu0 0.0
    %1348 = vmatpush2.xpose.msra.mxu0 0.0
    %1349 = vmatprep.subr.mxu0 0.0
    %1350 = vmatpush2.xpose.msra.mxu0 0.0
    %1351 = vmatprep.subr.mxu0 0.0
    %1352 = vmatpush2.xpose.msra.mxu0 0.0
    %1353 = vmatprep.subr.mxu0 0.0
    %1354 = vmatpush2.xpose.msra.mxu0 0.0
    %1355 = vmatprep.subr.mxu0 0.0
    %1356 = vmatpush2.xpose.msra.mxu0 0.0
    %1357 = vmatprep.subr.mxu0 0.0
    %1358 = vmatpush2.xpose.msra.mxu0 0.0
    %1359 = vmatprep.subr.mxu0 0.0
    %1360 = vmatpush2.xpose.msra.mxu0 0.0
    %1361 = vmatprep.subr.mxu0 0.0
    %1362 = vmatpush2.xpose.msra.mxu0 0.0
    %1363 = vmatprep.subr.mxu0 0.0
    %1364 = vmatpush2.xpose.msra.mxu0 0.0
    %1365 = vmatprep.subr.mxu0 0.0
    %1366 = vmatpush2.xpose.msra.mxu0 0.0
    %1367 = vmatprep.subr.mxu0 0.0
    %1368 = vmatpush2.xpose.msra.mxu0 0.0
    %1369 = vmatprep.subr.mxu0 0.0
    %1370 = vmatpush2.xpose.msra.mxu0 0.0
    %1371 = vmatprep.mubr.f32.mxu0 0.0
    %1372 = vmatmul.mubr.f32.gmra.mxu0 %v1303
    %v1373 = vpop.f32.mrf.mxu0
    %v1374 = vadd.f32 0.0, %v1373
    %v1375 = vpop.f32.mrf.mxu0
    %1376 = vdwg.mxu0
    %1377 = vrot.lane.b32.xlu0 %v214, 104
    %v1378 = vpop.permute.xlu0 %1377
    %1379 = vrot.lane.b32.xlu0 %v127, 104
    %v1380 = vpop.permute.xlu0 %1379
    %v1381 = vsel %vm48, %v1378, 0
    %v1383 = vsel %vm48, %v1380, 0
    %1385 = vmatprep.subr.mxu0 0.0
    %1386 = vmatpush1.xpose.msra.mxu0 0.0
    %1387 = vmatprep.subr.mxu0 0.0
    %1388 = vmatpush1.xpose.msra.mxu0 0.0
    %1389 = vmatprep.subr.mxu0 0.0
    %1390 = vmatpush1.xpose.msra.mxu0 0.0
    %1391 = vmatprep.subr.mxu0 0.0
    %1392 = vmatpush1.xpose.msra.mxu0 0.0
    %1393 = vmatprep.subr.mxu0 0.0
    %1394 = vmatpush1.xpose.msra.mxu0 0.0
    %1395 = vmatprep.subr.mxu0 0.0
    %1396 = vmatpush1.xpose.msra.mxu0 0.0
    %1397 = vmatprep.subr.mxu0 0.0
    %1398 = vmatpush1.xpose.msra.mxu0 0.0
    %1399 = vmatprep.subr.mxu0 0.0
    %1400 = vmatpush1.xpose.msra.mxu0 0.0
    %1401 = vmatprep.subr.mxu0 0.0
    %1402 = vmatpush1.xpose.msra.mxu0 0.0
    %1403 = vmatprep.subr.mxu0 0.0
    %1404 = vmatpush1.xpose.msra.mxu0 0.0
    %1405 = vmatprep.subr.mxu0 0.0
    %1406 = vmatpush1.xpose.msra.mxu0 0.0
    %1407 = vmatprep.subr.mxu0 0.0
    %1408 = vmatpush1.xpose.msra.mxu0 0.0
    %1409 = vmatprep.subr.mxu0 0.0
    %1410 = vmatpush1.xpose.msra.mxu0 0.0
    %1411 = vmatprep.subr.mxu0 0.0
    %1412 = vmatpush1.xpose.msra.mxu0 0.0
    %1413 = vmatprep.subr.mxu0 0.0
    %1414 = vmatpush1.xpose.msra.mxu0 0.0
    %1415 = vmatprep.subr.mxu0 0.0
    %1416 = vmatpush1.xpose.msra.mxu0 %v1383
    %1417 = vmatprep.subr.mxu0 0.0
    %1418 = vmatpush2.xpose.msra.mxu0 0.0
    %1419 = vmatprep.subr.mxu0 0.0
    %1420 = vmatpush2.xpose.msra.mxu0 0.0
    %1421 = vmatprep.subr.mxu0 0.0
    %1422 = vmatpush2.xpose.msra.mxu0 0.0
    %1423 = vmatprep.subr.mxu0 0.0
    %1424 = vmatpush2.xpose.msra.mxu0 0.0
    %1425 = vmatprep.subr.mxu0 0.0
    %1426 = vmatpush2.xpose.msra.mxu0 0.0
    %1427 = vmatprep.subr.mxu0 0.0
    %1428 = vmatpush2.xpose.msra.mxu0 0.0
    %1429 = vmatprep.subr.mxu0 0.0
    %1430 = vmatpush2.xpose.msra.mxu0 0.0
    %1431 = vmatprep.subr.mxu0 0.0
    %1432 = vmatpush2.xpose.msra.mxu0 0.0
    %1433 = vmatprep.subr.mxu0 0.0
    %1434 = vmatpush2.xpose.msra.mxu0 0.0
    %1435 = vmatprep.subr.mxu0 0.0
    %1436 = vmatpush2.xpose.msra.mxu0 0.0
    %1437 = vmatprep.subr.mxu0 0.0
    %1438 = vmatpush2.xpose.msra.mxu0 0.0
    %1439 = vmatprep.subr.mxu0 0.0
    %1440 = vmatpush2.xpose.msra.mxu0 0.0
    %1441 = vmatprep.subr.mxu0 0.0
    %1442 = vmatpush2.xpose.msra.mxu0 0.0
    %1443 = vmatprep.subr.mxu0 0.0
    %1444 = vmatpush2.xpose.msra.mxu0 0.0
    %1445 = vmatprep.subr.mxu0 0.0
    %1446 = vmatpush2.xpose.msra.mxu0 0.0
    %1447 = vmatprep.subr.mxu0 0.0
    %1448 = vmatpush2.xpose.msra.mxu0 0.0
    %1449 = vmatprep.mubr.f32.mxu0 0.0
    %1450 = vmatmul.mubr.f32.gmra.mxu0 %v1381
    %v1451 = vpop.f32.mrf.mxu0
    %v1452 = vadd.f32 0.0, %v1451
    %v1453 = vpop.f32.mrf.mxu0
    %1454 = vdwg.mxu0
    %v1455 = vmul.f32 %v1374, 0.35355338
    %v1456 = vmul.f32 %v1452, 0.35355338
    %v1457 = vsel %vm48, %v1455, -inf
    %1458 = vmax.xlane.f32.xlu0 %v1457
    %v1459 = vpop.xlane.xlu0 %1458
    %v1460 = vsel %vm48, %v1456, -inf
    %1461 = vmax.xlane.f32.xlu0 %v1460
    %v1462 = vpop.xlane.xlu0 %1461
    %v1463 = vsub.f32 %v1455, %v1459
    %v1464 = vsub.f32 %v1456, %v1462
    %v1465 = vmul.f32 %v1463, 1.442695
    %v1466 = vpow.pop %v1465
    %v1467 = vmul.f32 %v1464, 1.442695
    %v1468 = vpow.pop %v1467
    %v1469 = vsel %vm48, %v1466, 0.0
    %1470 = vadd.xlane.f32.xlu0 %v1469
    %v1471 = vpop.xlane.xlu0 %1470
    %v1472 = vsel %vm48, %v1468, 0.0
    %1473 = vadd.xlane.f32.xlu0 %v1472
    %v1474 = vpop.xlane.xlu0 %1473
    %v1475 = vrcp.pop %v1471
    %v1476 = vrcp.pop %v1474
    %v1477 = vmul.f32 %v1466, %v1475
    %v1478 = vmul.f32 %v1468, %v1476
    %v1479 = vsel %vm48, %v1477, 0.0
    %v1480 = vrot.slane %v1479, 4
    %v1481 = vadd.f32 %v1479, %v1480
    %v1482 = vrot.slane %v1481, 2
    %v1483 = vadd.f32 %v1481, %v1482
    %v1484 = vrot.slane %v1483, 1
    %v1485 = vadd.f32 %v1483, %v1484
    %v1486 = vsel %vm48, %v1478, 0.0
    %v1487 = vrot.slane %v1486, 4
    %v1488 = vadd.f32 %v1486, %v1487
    %v1489 = vrot.slane %v1488, 2
    %v1490 = vadd.f32 %v1488, %v1489
    %v1491 = vrot.slane %v1490, 1
    %v1492 = vadd.f32 %v1490, %v1491
    %1493 = vrot.lane.b32.xlu0 %v205, 104
    %v1494 = vpop.permute.xlu0 %1493
    %v1497 = vsel %vm48, %v1485, 0
    %1499 = vmatprep.subr.mxu0 0.0
    %1500 = vmatpush1.msra.mxu0 0.0
    %1501 = vmatprep.subr.mxu0 0.0
    %1502 = vmatpush1.msra.mxu0 0.0
    %1503 = vmatprep.subr.mxu0 0.0
    %1504 = vmatpush1.msra.mxu0 0.0
    %1505 = vmatprep.subr.mxu0 0.0
    %1506 = vmatpush1.msra.mxu0 0.0
    %1507 = vmatprep.subr.mxu0 0.0
    %1508 = vmatpush1.msra.mxu0 0.0
    %1509 = vmatprep.subr.mxu0 0.0
    %1510 = vmatpush1.msra.mxu0 0.0
    %1511 = vmatprep.subr.mxu0 0.0
    %1512 = vmatpush1.msra.mxu0 0.0
    %1513 = vmatprep.subr.mxu0 0.0
    %1514 = vmatpush1.msra.mxu0 0.0
    %1515 = vmatprep.subr.mxu0 0.0
    %1516 = vmatpush1.msra.mxu0 0.0
    %1517 = vmatprep.subr.mxu0 0.0
    %1518 = vmatpush1.msra.mxu0 0.0
    %1519 = vmatprep.subr.mxu0 0.0
    %1520 = vmatpush1.msra.mxu0 0.0
    %1521 = vmatprep.subr.mxu0 0.0
    %1522 = vmatpush1.msra.mxu0 0.0
    %1523 = vmatprep.subr.mxu0 0.0
    %1524 = vmatpush1.msra.mxu0 0.0
    %1525 = vmatprep.subr.mxu0 0.0
    %1526 = vmatpush1.msra.mxu0 0.0
    %1527 = vmatprep.subr.mxu0 0.0
    %1528 = vmatpush1.msra.mxu0 0.0
    %1529 = vmatprep.subr.mxu0 0.0
    %1530 = vmatpush1.msra.mxu0 %v1494
    %1531 = vmatprep.subr.mxu0 0.0
    %1532 = vmatpush2.msra.mxu0 0.0
    %1533 = vmatprep.subr.mxu0 0.0
    %1534 = vmatpush2.msra.mxu0 0.0
    %1535 = vmatprep.subr.mxu0 0.0
    %1536 = vmatpush2.msra.mxu0 0.0
    %1537 = vmatprep.subr.mxu0 0.0
    %1538 = vmatpush2.msra.mxu0 0.0
    %1539 = vmatprep.subr.mxu0 0.0
    %1540 = vmatpush2.msra.mxu0 0.0
    %1541 = vmatprep.subr.mxu0 0.0
    %1542 = vmatpush2.msra.mxu0 0.0
    %1543 = vmatprep.subr.mxu0 0.0
    %1544 = vmatpush2.msra.mxu0 0.0
    %1545 = vmatprep.subr.mxu0 0.0
    %1546 = vmatpush2.msra.mxu0 0.0
    %1547 = vmatprep.subr.mxu0 0.0
    %1548 = vmatpush2.msra.mxu0 0.0
    %1549 = vmatprep.subr.mxu0 0.0
    %1550 = vmatpush2.msra.mxu0 0.0
    %1551 = vmatprep.subr.mxu0 0.0
    %1552 = vmatpush2.msra.mxu0 0.0
    %1553 = vmatprep.subr.mxu0 0.0
    %1554 = vmatpush2.msra.mxu0 0.0
    %1555 = vmatprep.subr.mxu0 0.0
    %1556 = vmatpush2.msra.mxu0 0.0
    %1557 = vmatprep.subr.mxu0 0.0
    %1558 = vmatpush2.msra.mxu0 0.0
    %1559 = vmatprep.subr.mxu0 0.0
    %1560 = vmatpush2.msra.mxu0 0.0
    %1561 = vmatprep.subr.mxu0 0.0
    %1562 = vmatpush2.msra.mxu0 0.0
    %1563 = vmatprep.mubr.f32.mxu0 0.0
    %1564 = vmatmul.mubr.f32.gmra.mxu0 %v1497
    %v1565 = vpop.f32.mrf.mxu0
    %v1566 = vadd.f32 0.0, %v1565
    %v1567 = vpop.f32.mrf.mxu0
    %1568 = vdwg.mxu0
    %1569 = vrot.lane.b32.xlu0 %v210, 104
    %v1570 = vpop.permute.xlu0 %1569
    %v1573 = vsel %vm48, %v1492, 0
    %1575 = vmatprep.subr.mxu0 0.0
    %1576 = vmatpush1.msra.mxu0 0.0
    %1577 = vmatprep.subr.mxu0 0.0
    %1578 = vmatpush1.msra.mxu0 0.0
    %1579 = vmatprep.subr.mxu0 0.0
    %1580 = vmatpush1.msra.mxu0 0.0
    %1581 = vmatprep.subr.mxu0 0.0
    %1582 = vmatpush1.msra.mxu0 0.0
    %1583 = vmatprep.subr.mxu0 0.0
    %1584 = vmatpush1.msra.mxu0 0.0
    %1585 = vmatprep.subr.mxu0 0.0
    %1586 = vmatpush1.msra.mxu0 0.0
    %1587 = vmatprep.subr.mxu0 0.0
    %1588 = vmatpush1.msra.mxu0 0.0
    %1589 = vmatprep.subr.mxu0 0.0
    %1590 = vmatpush1.msra.mxu0 0.0
    %1591 = vmatprep.subr.mxu0 0.0
    %1592 = vmatpush1.msra.mxu0 0.0
    %1593 = vmatprep.subr.mxu0 0.0
    %1594 = vmatpush1.msra.mxu0 0.0
    %1595 = vmatprep.subr.mxu0 0.0
    %1596 = vmatpush1.msra.mxu0 0.0
    %1597 = vmatprep.subr.mxu0 0.0
    %1598 = vmatpush1.msra.mxu0 0.0
    %1599 = vmatprep.subr.mxu0 0.0
    %1600 = vmatpush1.msra.mxu0 0.0
    %1601 = vmatprep.subr.mxu0 0.0
    %1602 = vmatpush1.msra.mxu0 0.0
    %1603 = vmatprep.subr.mxu0 0.0
    %1604 = vmatpush1.msra.mxu0 0.0
    %1605 = vmatprep.subr.mxu0 0.0
    %1606 = vmatpush1.msra.mxu0 %v1570
    %1607 = vmatprep.subr.mxu0 0.0
    %1608 = vmatpush2.msra.mxu0 0.0
    %1609 = vmatprep.subr.mxu0 0.0
    %1610 = vmatpush2.msra.mxu0 0.0
    %1611 = vmatprep.subr.mxu0 0.0
    %1612 = vmatpush2.msra.mxu0 0.0
    %1613 = vmatprep.subr.mxu0 0.0
    %1614 = vmatpush2.msra.mxu0 0.0
    %1615 = vmatprep.subr.mxu0 0.0
    %1616 = vmatpush2.msra.mxu0 0.0
    %1617 = vmatprep.subr.mxu0 0.0
    %1618 = vmatpush2.msra.mxu0 0.0
    %1619 = vmatprep.subr.mxu0 0.0
    %1620 = vmatpush2.msra.mxu0 0.0
    %1621 = vmatprep.subr.mxu0 0.0
    %1622 = vmatpush2.msra.mxu0 0.0
    %1623 = vmatprep.subr.mxu0 0.0
    %1624 = vmatpush2.msra.mxu0 0.0
    %1625 = vmatprep.subr.mxu0 0.0
    %1626 = vmatpush2.msra.mxu0 0.0
    %1627 = vmatprep.subr.mxu0 0.0
    %1628 = vmatpush2.msra.mxu0 0.0
    %1629 = vmatprep.subr.mxu0 0.0
    %1630 = vmatpush2.msra.mxu0 0.0
    %1631 = vmatprep.subr.mxu0 0.0
    %1632 = vmatpush2.msra.mxu0 0.0
    %1633 = vmatprep.subr.mxu0 0.0
    %1634 = vmatpush2.msra.mxu0 0.0
    %1635 = vmatprep.subr.mxu0 0.0
    %1636 = vmatpush2.msra.mxu0 0.0
    %1637 = vmatprep.subr.mxu0 0.0
    %1638 = vmatpush2.msra.mxu0 0.0
    %1639 = vmatprep.mubr.f32.mxu0 0.0
    %1640 = vmatmul.mubr.f32.gmra.mxu0 %v1573
    %v1641 = vpop.f32.mrf.mxu0
    %v1642 = vadd.f32 0.0, %v1641
    %v1643 = vpop.f32.mrf.mxu0
    %1644 = vdwg.mxu0
    %vm1645 = vcmp.gt.f32.partialorder %v1566, 0.0
    %vm1646 = vcmp.gt.f32.partialorder %v1642, 0.0
    %v1647 = vmul.f32 %v1566, 0.01
    %v1648 = vmul.f32 %v1642, 0.01
    %v1649 = vsel %vm1645, %v1566, %v1647
    %v1650 = vsel %vm1646, %v1642, %v1648
    %1651 = vrot.lane.b32.xlu0 %v922, 104
    %v1652 = vpop.permute.xlu0 %1651
    %1653 = vrot.lane.b32.xlu0 %v926, 104
    %v1654 = vpop.permute.xlu0 %1653
    %v1657 = vmul.f32 %v1649, %v1652
    %v1658 = vmul.f32 %v1650, %v1654
    %v1659 = vadd.f32 %v1297, %v1657
    %v1660 = vadd.f32 %v1298, %v1658
    %vm1661 = vcmask 57344
    %v1662 = vsel %vm1661, %v1659, 0.0
    %1663 = vadd.xlane.f32.xlu0 %v1662
    %v1664 = vpop.xlane.xlu0 %1663
    %v1665 = vsel %vm1661, %v1660, 0.0
    %1666 = vadd.xlane.f32.xlu0 %v1665
    %v1667 = vpop.xlane.xlu0 %1666
    %v1670 = vrot.slane %v1667, 7
    %vm1671 = vcmask 1041409
    %v1672 = vsel %vm1671, %v1670, %v1664
    %vm1674 = vcmask 1024
    %1675 = vst.msk [vmem:[%s7] sm:$0x3] %vm1674, %v1672
    // Predicated region
    $region34: #{tpu_custom_call.1} parent=1 // pred_check
      _
    $region35: #{tpu_custom_call.1} parent=1 // pred_check_branch
      %1677 = sbr.rel (0) target = $region37
    $region36: #{tpu_custom_call.1} parent=1 // pred_region
      _
    $region37: #{tpu_custom_call.1} parent=1 // pred_fallthru
      _
    // Predicated region
    $region38: #{tpu_custom_call.1} parent=1 // pred_check
      _
    $region39: #{tpu_custom_call.1} parent=1 // pred_check_branch
      %1679 = sbr.rel (0) target = $region41
    $region40: #{tpu_custom_call.1} parent=1 // pred_region
      _
    $region41: #{tpu_custom_call.1} parent=1 // pred_fallthru
      _
    %1680 = vsyncpa [#allocation3], 1

</llo_original>
